<compile_context>
chip_gen: v7x
topology: tpu7x:2x2x1
jax: 0.10.0
libtpu: 0.0.40
codegen_flags: <defaults>
</compile_context>

<pallas_src>
import functools

import jax
import jax.numpy as jnp
from jax import lax
from jax.experimental import pallas as pl
from jax.experimental.pallas import tpu as pltpu

BN_EPS = 1e-5
LANE = 128


def _round_up(x, m):
    return (x + m - 1) // m * m


def _pick_tile(n, max_tile=2048):
    """Largest multiple-of-16 divisor of n that is <= max_tile (bf16 sublanes)."""
    if n <= max_tile:
        return n
    best = None
    t = 16
    while t <= max_tile:
        if n % t == 0:
            best = t
        t += 16
    return best if best is not None else n


def edge_mlp_kernel(x_ref, w1_ref, w2_ref, gamma_ref, beta_ref, o_ref,
                    bn1_sum, bn1_sq, bn2_sum, bn2_sq,
                    scale2_ref, shift2_ref, w2f_ref, bias2_ref, *, inv_n):
    p = pl.program_id(0)          # pass: 0 = BN1 stats, 1 = BN2 stats, 2 = write
    i = pl.program_id(1)          # N-tile index
    last = pl.num_programs(1) - 1
    d_out_p = w2_ref.shape[0]

    @pl.when((p == 0) & (i == 0))
    def _init_bn1():
        bn1_sum[...] = jnp.zeros_like(bn1_sum)
        bn1_sq[...] = jnp.zeros_like(bn1_sq)

    @pl.when((p == 1) & (i == 0))
    def _init_bn2():
        bn2_sum[...] = jnp.zeros_like(bn2_sum)
        bn2_sq[...] = jnp.zeros_like(bn2_sq)

    # h = relu(x @ W1): recomputed every pass -- the K=32 bf16 matmul is nearly
    # free on the MXU compared with stashing an (N,128) f32 slab to HBM.
    h = jnp.maximum(
        jnp.dot(x_ref[...], w1_ref[...], preferred_element_type=jnp.float32), 0.0)
    # Dropout: inference mode => identity.
    # TODO(synk): training-mode dropout (pltpu PRNG mask) not implemented.

    def second_layer():
        # BN1 already folded into W2:  (h*scale1 + shift1) @ W2 == h @ W2' + b'
        return jnp.maximum(
            jnp.dot(h.astype(jnp.bfloat16), w2f_ref[...],
                    preferred_element_type=jnp.float32) + bias2_ref[...], 0.0)

    @pl.when(p == 0)
    def _pass0():
        bn1_sum[...] += jnp.sum(h, axis=0, keepdims=True)
        bn1_sq[...] += jnp.sum(h * h, axis=0, keepdims=True)

        @pl.when(i == last)
        def _finalize_bn1():
            mean = bn1_sum[...] * inv_n
            var = jnp.maximum(bn1_sq[...] * inv_n - mean * mean, 0.0)
            scale1 = gamma_ref[...] * lax.rsqrt(var + BN_EPS)      # (1, Dp)
            shift1 = beta_ref[...] - mean * scale1                 # (1, Dp)
            # Fold BN1 into the second Linear without any lane->sublane relayout:
            #   W2' = diag(scale1) @ W2  (iota mask + one MXU matmul)
            #   b'  = shift1 @ W2        (diag(shift1) @ W2, then sublane-reduce)
            w2_f32 = w2_ref[...].astype(jnp.float32)
            r = lax.broadcasted_iota(jnp.int32, (d_out_p, d_out_p), 0)
            c = lax.broadcasted_iota(jnp.int32, (d_out_p, d_out_p), 1)
            diag_scale = jnp.where(r == c, scale1, 0.0)
            diag_shift = jnp.where(r == c, shift1, 0.0)
            w2f_ref[...] = jnp.dot(
                diag_scale, w2_f32,
                preferred_element_type=jnp.float32).astype(jnp.bfloat16)
            shift_rows = jnp.dot(diag_shift, w2_f32,
                                 preferred_element_type=jnp.float32)
            bias2_ref[...] = jnp.sum(shift_rows, axis=0, keepdims=True)

    @pl.when(p == 1)
    def _pass1():
        y = second_layer()
        bn2_sum[...] += jnp.sum(y, axis=0, keepdims=True)
        bn2_sq[...] += jnp.sum(y * y, axis=0, keepdims=True)

        @pl.when(i == last)
        def _finalize_bn2():
            mean = bn2_sum[...] * inv_n
            var = jnp.maximum(bn2_sq[...] * inv_n - mean * mean, 0.0)
            s2 = gamma_ref[...] * lax.rsqrt(var + BN_EPS)
            scale2_ref[...] = s2
            shift2_ref[...] = beta_ref[...] - mean * s2

    @pl.when(p == 2)
    def _pass2():
        y = second_layer()
        out = y * scale2_ref[...] + shift2_ref[...]
        # Store only the real d_out columns (padded columns are exactly zero and
        # would just be 4x extra HBM writeback).
        o_ref[...] = out[:, :o_ref.shape[1]].astype(o_ref.dtype)


def edge_mlp(x, w1, w2, gamma, beta, *, tile_n=None):
    """x: (N, D_in) f32; w1: (D_in, D_out); w2: (D_out, D_out); gamma/beta: (1, D_out).

    Weights are the nn.Linear weights pre-transposed to (in, out).
    """
    N, d_in = x.shape
    d_out = w1.shape[1]
    assert w2.shape == (d_out, d_out)
    d_out_p = _round_up(d_out, LANE)

    if tile_n is None:
        tile_n = _pick_tile(N)
    if N % tile_n != 0:
        # TODO(synk): ragged N needs row padding + masked BN stats; fall back to
        # a single fully-resident tile for now.
        tile_n = N
    num_tiles = N // tile_n

    # Host-side prep: x in bf16 and UNPADDED on the feature axis; only the
    # hidden width is zero-padded to a lane-dense 128 (padded gamma/beta = 0
    # keeps padded columns exactly zero through ReLU and both BN blocks).
    x_bf = x.astype(jnp.bfloat16)
    w1_p = jnp.pad(w1.astype(jnp.float32),
                   ((0, 0), (0, d_out_p - d_out))).astype(jnp.bfloat16)
    w2_p = jnp.pad(w2.astype(jnp.float32),
                   ((0, d_out_p - d_out), (0, d_out_p - d_out))).astype(jnp.bfloat16)
    g_p = jnp.pad(jnp.reshape(gamma, (1, d_out)).astype(jnp.float32),
                  ((0, 0), (0, d_out_p - d_out)))
    b_p = jnp.pad(jnp.reshape(beta, (1, d_out)).astype(jnp.float32),
                  ((0, 0), (0, d_out_p - d_out)))

    kernel = functools.partial(edge_mlp_kernel, inv_n=1.0 / N)

    flops = int(3 * 2 * N * d_in * d_out_p + 2 * 2 * N * d_out_p * d_out_p
                + 10 * N * d_out_p)
    bytes_accessed = int(3 * N * d_in * 2 + N * d_out * 4
                         + d_in * d_out_p * 2 + d_out_p * d_out_p * 2
                         + 4 * d_out_p * 4)

    out = pl.pallas_call(
        kernel,
        out_shape=jax.ShapeDtypeStruct((N, d_out), jnp.float32),
        grid_spec=pltpu.PrefetchScalarGridSpec(
            num_scalar_prefetch=0,
            grid=(3, num_tiles),
            in_specs=[
                pl.BlockSpec((tile_n, d_in), lambda p, i: (i, 0)),        # x (bf16)
                pl.BlockSpec((d_in, d_out_p), lambda p, i: (0, 0)),       # W1 resident
                pl.BlockSpec((d_out_p, d_out_p), lambda p, i: (0, 0)),    # W2 resident
                pl.BlockSpec((1, d_out_p), lambda p, i: (0, 0)),          # gamma
                pl.BlockSpec((1, d_out_p), lambda p, i: (0, 0)),          # beta
            ],
            # Output blocks only advance on the final pass; earlier passes pin
            # block 0 so no garbage is ever written back and no block is revisited.
            out_specs=pl.BlockSpec(
                (tile_n, d_out), lambda p, i: (jnp.where(p == 2, i, 0), 0)),
            scratch_shapes=[
                pltpu.VMEM((1, d_out_p), jnp.float32),          # BN1 sum
                pltpu.VMEM((1, d_out_p), jnp.float32),          # BN1 sum of squares
                pltpu.VMEM((1, d_out_p), jnp.float32),          # BN2 sum
                pltpu.VMEM((1, d_out_p), jnp.float32),          # BN2 sum of squares
                pltpu.VMEM((1, d_out_p), jnp.float32),          # scale2
                pltpu.VMEM((1, d_out_p), jnp.float32),          # shift2
                pltpu.VMEM((d_out_p, d_out_p), jnp.bfloat16),   # BN1-folded W2
                pltpu.VMEM((1, d_out_p), jnp.float32),          # BN1-folded bias
            ]),
        compiler_params=pltpu.CompilerParams(
            dimension_semantics=("arbitrary", "arbitrary"),
            vmem_limit_bytes=32 * 1024 * 1024),
        cost_estimate=pl.CostEstimate(
            flops=flops, transcendentals=2 * d_out_p,
            bytes_accessed=bytes_accessed),
    )(x_bf, w1_p, w2_p, g_p, b_p)
    return out


def edge_mlp_ref(x, w1, w2, gamma, beta):
    """Plain-f32 reference mirroring the PyTorch forward."""
    gamma = jnp.reshape(gamma, (1, -1))
    beta = jnp.reshape(beta, (1, -1))
    hp = lax.Precision.HIGHEST

    def bn(a):
        m = a.mean(0, keepdims=True)
        v = ((a - m) ** 2).mean(0, keepdims=True)
        return (a - m) / jnp.sqrt(v + BN_EPS) * gamma + beta

    h = jnp.maximum(jnp.dot(x, w1, precision=hp), 0.0)
    h = bn(h)
    y = jnp.maximum(jnp.dot(h, w2, precision=hp), 0.0)
    return bn(y)


def edge_mlp_ref_bf16(x, w1, w2, gamma, beta):
    """Reference mirroring the kernel's bf16 MXU operands and BN1-into-W2 fold."""
    f32 = jnp.float32
    hp = lax.Precision.HIGHEST
    q = lambda a: a.astype(jnp.bfloat16).astype(f32)
    gamma = jnp.reshape(gamma, (1, -1)).astype(f32)
    beta = jnp.reshape(beta, (1, -1)).astype(f32)
    n = x.shape[0]

    h = jnp.maximum(jnp.dot(q(x), q(w1), precision=hp), 0.0)
    mean1 = h.sum(0, keepdims=True) / n
    var1 = jnp.maximum((h * h).sum(0, keepdims=True) / n - mean1 * mean1, 0.0)
    scale1 = gamma * lax.rsqrt(var1 + BN_EPS)
    shift1 = beta - mean1 * scale1

    w2q = q(w2)
    w2f = q(scale1.T * w2q)
    bias2 = jnp.dot(shift1, w2q, precision=hp)
    y = jnp.maximum(jnp.dot(q(h), w2f, precision=hp) + bias2, 0.0)

    mean2 = y.sum(0, keepdims=True) / n
    var2 = jnp.maximum((y * y).sum(0, keepdims=True) / n - mean2 * mean2, 0.0)
    scale2 = gamma * lax.rsqrt(var2 + BN_EPS)
    shift2 = beta - mean2 * scale2
    return y * scale2 + shift2


if __name__ == "__main__":
    # Small shapes consistent with the module: N=64 edges, input_dim=32, output_dim=32.
    # tile_n=16 so the demo actually exercises the tiled multi-pass BN (grid (3, 4)).
    N, D_IN, D_OUT = 64, 32, 32

    key = jax.random.PRNGKey(0)
    kx, k1, k2, kg, kb = jax.random.split(key, 5)

    x = jax.random.normal(kx, (N, D_IN), dtype=jnp.float32)

    # nn.Linear weight shapes are (out, in); pre-transposed here to (in, out).
    bound1 = 1.0 / (D_IN ** 0.5)
    bound2 = 1.0 / (D_OUT ** 0.5)
    w1 = jax.random.uniform(k1, (D_IN, D_OUT), jnp.float32, -bound1, bound1)
    w2 = jax.random.uniform(k2, (D_OUT, D_OUT), jnp.float32, -bound2, bound2)

    # BatchNorm1d affine params (PyTorch default gamma=1, beta=0); perturbed so
    # the affine path is exercised.
    gamma = 1.0 + 0.1 * jax.random.normal(kg, (1, D_OUT), jnp.float32)
    beta = 0.1 * jax.random.normal(kb, (1, D_OUT), jnp.float32)

    out = jax.block_until_ready(edge_mlp(x, w1, w2, gamma, beta, tile_n=16))
    assert out.shape == (N, D_OUT)

    # Tight check vs. a plain-JAX path with identically bf16-quantized MXU
    # operands and the same BN1-into-W2 fold.
    ref_q = edge_mlp_ref_bf16(x, w1, w2, gamma, beta)
    err_q = float(jnp.max(jnp.abs(out - ref_q)))
    assert jnp.allclose(out, ref_q, atol=2e-2, rtol=2e-2), err_q

    # Loose check vs. the full-f32 PyTorch-style forward (bf16 matmul tolerance).
    ref_f = edge_mlp_ref(x, w1, w2, gamma, beta)
    err_f = float(jnp.max(jnp.abs(out - ref_f)))
    assert jnp.allclose(out, ref_f, atol=1e-1, rtol=1e-1), err_f

    print("KERNEL_OK")
</pallas_src>

<mosaic_0001>
module attributes {stable_mosaic.version = 11 : i64} {
  func.func @edge_mlp_kernel(%arg0: i32, %arg1: i32, %arg2: memref<16x32xbf16, #tpu.memory_space<vmem>>, %arg3: memref<32x128xbf16, #tpu.memory_space<vmem>>, %arg4: memref<128x128xbf16, #tpu.memory_space<vmem>>, %arg5: memref<1x128xf32, #tpu.memory_space<vmem>>, %arg6: memref<1x128xf32, #tpu.memory_space<vmem>>, %arg7: memref<16x32xf32, #tpu.memory_space<vmem>>, %arg8: memref<1x128xf32, #tpu.memory_space<vmem>>, %arg9: memref<1x128xf32, #tpu.memory_space<vmem>>, %arg10: memref<1x128xf32, #tpu.memory_space<vmem>>, %arg11: memref<1x128xf32, #tpu.memory_space<vmem>>, %arg12: memref<1x128xf32, #tpu.memory_space<vmem>>, %arg13: memref<1x128xf32, #tpu.memory_space<vmem>>, %arg14: memref<128x128xbf16, #tpu.memory_space<vmem>>, %arg15: memref<1x128xf32, #tpu.memory_space<vmem>>) attributes {dimension_semantics = [#tpu.dimension_semantics<arbitrary>, #tpu.dimension_semantics<arbitrary>], iteration_bounds = array<i64: 3, 4>, scalar_prefetch = 0 : i64, scratch_operands = 8 : i64, tpu.core_type = #tpu.core_type<tc>, window_params = [{transform_indices = @transform_0, window_bounds = array<i64: 16, 32>}, {pipeline_mode = #tpu.pipeline_mode<synchronous>, transform_indices = @transform_1, window_bounds = array<i64: 32, 128>}, {pipeline_mode = #tpu.pipeline_mode<synchronous>, transform_indices = @transform_2, window_bounds = array<i64: 128, 128>}, {pipeline_mode = #tpu.pipeline_mode<synchronous>, transform_indices = @transform_3, window_bounds = array<i64: 1, 128>}, {pipeline_mode = #tpu.pipeline_mode<synchronous>, transform_indices = @transform_4, window_bounds = array<i64: 1, 128>}, {transform_indices = @transform_5, window_bounds = array<i64: 16, 32>}]} {
    %c0_i32 = arith.constant 0 : i32
    %0 = arith.cmpi eq, %arg0, %c0_i32 : i32
    %c0_i32_0 = arith.constant 0 : i32
    %1 = arith.cmpi eq, %arg1, %c0_i32_0 : i32
    %2 = arith.andi %0, %1 : i1
    %3 = arith.extui %2 : i1 to i32
    %c0_i32_1 = arith.constant 0 : i32
    %4 = arith.cmpi ne, %3, %c0_i32_1 : i32
    scf.if %4 {
      %cst_13 = arith.constant 0.000000e+00 : f32
      %24 = vector.broadcast %cst_13 : f32 to vector<1x128xf32>
      %c0_14 = arith.constant 0 : index
      %c0_15 = arith.constant 0 : index
      %25 = vector.load %arg8[%c0_14, %c0_15] : memref<1x128xf32, #tpu.memory_space<vmem>>, vector<1x128xf32>
      tpu.vector_store %arg8[%c0_14, %c0_15], %24 {strides = array<i32>} : memref<1x128xf32, #tpu.memory_space<vmem>>, vector<1x128xf32>,
      %cst_16 = arith.constant 0.000000e+00 : f32
      %26 = vector.broadcast %cst_16 : f32 to vector<1x128xf32>
      %c0_17 = arith.constant 0 : index
      %c0_18 = arith.constant 0 : index
      %27 = vector.load %arg9[%c0_17, %c0_18] : memref<1x128xf32, #tpu.memory_space<vmem>>, vector<1x128xf32>
      tpu.vector_store %arg9[%c0_17, %c0_18], %26 {strides = array<i32>} : memref<1x128xf32, #tpu.memory_space<vmem>>, vector<1x128xf32>,
    } else {
    }
    %c1_i32 = arith.constant 1 : i32
    %5 = arith.cmpi eq, %arg0, %c1_i32 : i32
    %c0_i32_2 = arith.constant 0 : i32
    %6 = arith.cmpi eq, %arg1, %c0_i32_2 : i32
    %7 = arith.andi %5, %6 : i1
    %8 = arith.extui %7 : i1 to i32
    %c0_i32_3 = arith.constant 0 : i32
    %9 = arith.cmpi ne, %8, %c0_i32_3 : i32
    scf.if %9 {
      %cst_13 = arith.constant 0.000000e+00 : f32
      %24 = vector.broadcast %cst_13 : f32 to vector<1x128xf32>
      %c0_14 = arith.constant 0 : index
      %c0_15 = arith.constant 0 : index
      %25 = vector.load %arg10[%c0_14, %c0_15] : memref<1x128xf32, #tpu.memory_space<vmem>>, vector<1x128xf32>
      tpu.vector_store %arg10[%c0_14, %c0_15], %24 {strides = array<i32>} : memref<1x128xf32, #tpu.memory_space<vmem>>, vector<1x128xf32>,
      %cst_16 = arith.constant 0.000000e+00 : f32
      %26 = vector.broadcast %cst_16 : f32 to vector<1x128xf32>
      %c0_17 = arith.constant 0 : index
      %c0_18 = arith.constant 0 : index
      %27 = vector.load %arg11[%c0_17, %c0_18] : memref<1x128xf32, #tpu.memory_space<vmem>>, vector<1x128xf32>
      tpu.vector_store %arg11[%c0_17, %c0_18], %26 {strides = array<i32>} : memref<1x128xf32, #tpu.memory_space<vmem>>, vector<1x128xf32>,
    } else {
    }
    %c0 = arith.constant 0 : index
    %c0_4 = arith.constant 0 : index
    %10 = vector.load %arg2[%c0, %c0_4] : memref<16x32xbf16, #tpu.memory_space<vmem>>, vector<16x32xbf16>
    %c0_5 = arith.constant 0 : index
    %c0_6 = arith.constant 0 : index
    %11 = vector.load %arg3[%c0_5, %c0_6] : memref<32x128xbf16, #tpu.memory_space<vmem>>, vector<32x128xbf16>
    %cst = arith.constant dense<0.000000e+00> : vector<16x128xf32>
    %12 = tpu.matmul %10, %11, %cst {dimension_numbers = #tpu.dot_dimension_numbers<[1], [0], [0], [1], [0, 0, 1, 1], [], []>} : vector<16x32xbf16>, vector<32x128xbf16>, vector<16x128xf32> -> vector<16x128xf32>
    %cst_7 = arith.constant 0.000000e+00 : f32
    %13 = vector.broadcast %cst_7 : f32 to vector<16x128xf32>
    %14 = arith.maximumf %12, %13 : vector<16x128xf32>
    %c0_i32_8 = arith.constant 0 : i32
    %15 = arith.cmpi eq, %arg0, %c0_i32_8 : i32
    %16 = arith.extui %15 : i1 to i32
    %c0_i32_9 = arith.constant 0 : i32
    %17 = arith.cmpi ne, %16, %c0_i32_9 : i32
    scf.if %17 {
      %c0_13 = arith.constant 0 : index
      %c0_14 = arith.constant 0 : index
      %24 = vector.load %arg8[%c0_13, %c0_14] : memref<1x128xf32, #tpu.memory_space<vmem>>, vector<1x128xf32>
      %cst_15 = arith.constant dense<0.000000e+00> : vector<128xf32>
      %25 = vector.multi_reduction <add>, %14, %cst_15 [0] : vector<16x128xf32> to vector<128xf32>
      %26 = vector.shape_cast %25 : vector<128xf32> to vector<1x128xf32>
      %27 = arith.addf %24, %26 : vector<1x128xf32>
      %c0_16 = arith.constant 0 : index
      %c0_17 = arith.constant 0 : index
      %28 = vector.load %arg8[%c0_16, %c0_17] : memref<1x128xf32, #tpu.memory_space<vmem>>, vector<1x128xf32>
      tpu.vector_store %arg8[%c0_16, %c0_17], %27 {strides = array<i32>} : memref<1x128xf32, #tpu.memory_space<vmem>>, vector<1x128xf32>,
      %c0_18 = arith.constant 0 : index
      %c0_19 = arith.constant 0 : index
      %29 = vector.load %arg9[%c0_18, %c0_19] : memref<1x128xf32, #tpu.memory_space<vmem>>, vector<1x128xf32>
      %30 = arith.mulf %14, %14 : vector<16x128xf32>
      %cst_20 = arith.constant dense<0.000000e+00> : vector<128xf32>
      %31 = vector.multi_reduction <add>, %30, %cst_20 [0] : vector<16x128xf32> to vector<128xf32>
      %32 = vector.shape_cast %31 : vector<128xf32> to vector<1x128xf32>
      %33 = arith.addf %29, %32 : vector<1x128xf32>
      %c0_21 = arith.constant 0 : index
      %c0_22 = arith.constant 0 : index
      %34 = vector.load %arg9[%c0_21, %c0_22] : memref<1x128xf32, #tpu.memory_space<vmem>>, vector<1x128xf32>
      tpu.vector_store %arg9[%c0_21, %c0_22], %33 {strides = array<i32>} : memref<1x128xf32, #tpu.memory_space<vmem>>, vector<1x128xf32>,
      %c3_i32 = arith.constant 3 : i32
      %35 = arith.cmpi eq, %arg1, %c3_i32 : i32
      %36 = arith.extui %35 : i1 to i32
      %c0_i32_23 = arith.constant 0 : i32
      %37 = arith.cmpi ne, %36, %c0_i32_23 : i32
      scf.if %37 {
        %c0_24 = arith.constant 0 : index
        %c0_25 = arith.constant 0 : index
        %38 = vector.load %arg8[%c0_24, %c0_25] : memref<1x128xf32, #tpu.memory_space<vmem>>, vector<1x128xf32>
        %cst_26 = arith.constant 1.562500e-02 : f32
        %39 = vector.broadcast %cst_26 : f32 to vector<1x128xf32>
        %40 = arith.mulf %38, %39 : vector<1x128xf32>
        %c0_27 = arith.constant 0 : index
        %c0_28 = arith.constant 0 : index
        %41 = vector.load %arg9[%c0_27, %c0_28] : memref<1x128xf32, #tpu.memory_space<vmem>>, vector<1x128xf32>
        %cst_29 = arith.constant 1.562500e-02 : f32
        %42 = vector.broadcast %cst_29 : f32 to vector<1x128xf32>
        %43 = arith.mulf %41, %42 : vector<1x128xf32>
        %44 = arith.mulf %40, %40 : vector<1x128xf32>
        %45 = arith.subf %43, %44 : vector<1x128xf32>
        %cst_30 = arith.constant 0.000000e+00 : f32
        %46 = vector.broadcast %cst_30 : f32 to vector<1x128xf32>
        %47 = arith.maximumf %45, %46 : vector<1x128xf32>
        %c0_31 = arith.constant 0 : index
        %c0_32 = arith.constant 0 : index
        %48 = vector.load %arg5[%c0_31, %c0_32] : memref<1x128xf32, #tpu.memory_space<vmem>>, vector<1x128xf32>
        %cst_33 = arith.constant 9.99999974E-6 : f32
        %49 = vector.broadcast %cst_33 : f32 to vector<1x128xf32>
        %50 = arith.addf %47, %49 : vector<1x128xf32>
        %51 = math.rsqrt %50 : vector<1x128xf32>
        %52 = arith.mulf %48, %51 : vector<1x128xf32>
        %c0_34 = arith.constant 0 : index
        %c0_35 = arith.constant 0 : index
        %53 = vector.load %arg6[%c0_34, %c0_35] : memref<1x128xf32, #tpu.memory_space<vmem>>, vector<1x128xf32>
        %54 = arith.mulf %40, %52 : vector<1x128xf32>
        %55 = arith.subf %53, %54 : vector<1x128xf32>
        %c0_36 = arith.constant 0 : index
        %c0_37 = arith.constant 0 : index
        %56 = vector.load %arg4[%c0_36, %c0_37] : memref<128x128xbf16, #tpu.memory_space<vmem>>, vector<128x128xbf16>
        %57 = arith.extf %56 : vector<128x128xbf16> to vector<128x128xf32>
        %58 = tpu.iota {dimensions = array<i32: 0>} : vector<128x128xi32>
        %59 = tpu.iota {dimensions = array<i32: 1>} : vector<128x128xi32>
        %60 = arith.cmpi eq, %58, %59 : vector<128x128xi32>
        %cst_38 = arith.constant 0.000000e+00 : f32
        %61 = vector.shape_cast %52 : vector<1x128xf32> to vector<1x128xf32>
        %62 = vector.broadcast %61 : vector<1x128xf32> to vector<128x128xf32>
        %63 = vector.broadcast %cst_38 : f32 to vector<128x128xf32>
        %64 = arith.select %60, %62, %63 : vector<128x128xi1>, vector<128x128xf32>
        %65 = arith.cmpi eq, %58, %59 : vector<128x128xi32>
        %cst_39 = arith.constant 0.000000e+00 : f32
        %66 = vector.shape_cast %55 : vector<1x128xf32> to vector<1x128xf32>
        %67 = vector.broadcast %66 : vector<1x128xf32> to vector<128x128xf32>
        %68 = vector.broadcast %cst_39 : f32 to vector<128x128xf32>
        %69 = arith.select %65, %67, %68 : vector<128x128xi1>, vector<128x128xf32>
        %cst_40 = arith.constant dense<0.000000e+00> : vector<128x128xf32>
        %70 = tpu.matmul %64, %57, %cst_40 {dimension_numbers = #tpu.dot_dimension_numbers<[1], [0], [0], [1], [0, 0, 1, 1], [], []>} : vector<128x128xf32>, vector<128x128xf32>, vector<128x128xf32> -> vector<128x128xf32>
        %71 = arith.truncf %70 : vector<128x128xf32> to vector<128x128xbf16>
        %c0_41 = arith.constant 0 : index
        %c0_42 = arith.constant 0 : index
        %72 = vector.load %arg14[%c0_41, %c0_42] : memref<128x128xbf16, #tpu.memory_space<vmem>>, vector<128x128xbf16>
        tpu.vector_store %arg14[%c0_41, %c0_42], %71 {strides = array<i32>} : memref<128x128xbf16, #tpu.memory_space<vmem>>, vector<128x128xbf16>,
        %cst_43 = arith.constant dense<0.000000e+00> : vector<128x128xf32>
        %73 = tpu.matmul %69, %57, %cst_43 {dimension_numbers = #tpu.dot_dimension_numbers<[1], [0], [0], [1], [0, 0, 1, 1], [], []>} : vector<128x128xf32>, vector<128x128xf32>, vector<128x128xf32> -> vector<128x128xf32>
        %cst_44 = arith.constant dense<0.000000e+00> : vector<128xf32>
        %74 = vector.multi_reduction <add>, %73, %cst_44 [0] : vector<128x128xf32> to vector<128xf32>
        %75 = vector.shape_cast %74 : vector<128xf32> to vector<1x128xf32>
        %c0_45 = arith.constant 0 : index
        %c0_46 = arith.constant 0 : index
        %76 = vector.load %arg15[%c0_45, %c0_46] : memref<1x128xf32, #tpu.memory_space<vmem>>, vector<1x128xf32>
        tpu.vector_store %arg15[%c0_45, %c0_46], %75 {strides = array<i32>} : memref<1x128xf32, #tpu.memory_space<vmem>>, vector<1x128xf32>,
      } else {
      }
    } else {
    }
    %c1_i32_10 = arith.constant 1 : i32
    %18 = arith.cmpi eq, %arg0, %c1_i32_10 : i32
    %19 = arith.extui %18 : i1 to i32
    %c0_i32_11 = arith.constant 0 : i32
    %20 = arith.cmpi ne, %19, %c0_i32_11 : i32
    scf.if %20 {
      %24 = arith.truncf %14 : vector<16x128xf32> to vector<16x128xbf16>
      %c0_13 = arith.constant 0 : index
      %c0_14 = arith.constant 0 : index
      %25 = vector.load %arg14[%c0_13, %c0_14] : memref<128x128xbf16, #tpu.memory_space<vmem>>, vector<128x128xbf16>
      %cst_15 = arith.constant dense<0.000000e+00> : vector<16x128xf32>
      %26 = tpu.matmul %24, %25, %cst_15 {dimension_numbers = #tpu.dot_dimension_numbers<[1], [0], [0], [1], [0, 0, 1, 1], [], []>} : vector<16x128xbf16>, vector<128x128xbf16>, vector<16x128xf32> -> vector<16x128xf32>
      %c0_16 = arith.constant 0 : index
      %c0_17 = arith.constant 0 : index
      %27 = vector.load %arg15[%c0_16, %c0_17] : memref<1x128xf32, #tpu.memory_space<vmem>>, vector<1x128xf32>
      %28 = vector.broadcast %27 : vector<1x128xf32> to vector<16x128xf32>
      %29 = arith.addf %26, %28 : vector<16x128xf32>
      %cst_18 = arith.constant 0.000000e+00 : f32
      %30 = vector.broadcast %cst_18 : f32 to vector<16x128xf32>
      %31 = arith.maximumf %29, %30 : vector<16x128xf32>
      %c0_19 = arith.constant 0 : index
      %c0_20 = arith.constant 0 : index
      %32 = vector.load %arg10[%c0_19, %c0_20] : memref<1x128xf32, #tpu.memory_space<vmem>>, vector<1x128xf32>
      %cst_21 = arith.constant dense<0.000000e+00> : vector<128xf32>
      %33 = vector.multi_reduction <add>, %31, %cst_21 [0] : vector<16x128xf32> to vector<128xf32>
      %34 = vector.shape_cast %33 : vector<128xf32> to vector<1x128xf32>
      %35 = arith.addf %32, %34 : vector<1x128xf32>
      %c0_22 = arith.constant 0 : index
      %c0_23 = arith.constant 0 : index
      %36 = vector.load %arg10[%c0_22, %c0_23] : memref<1x128xf32, #tpu.memory_space<vmem>>, vector<1x128xf32>
      tpu.vector_store %arg10[%c0_22, %c0_23], %35 {strides = array<i32>} : memref<1x128xf32, #tpu.memory_space<vmem>>, vector<1x128xf32>,
      %c0_24 = arith.constant 0 : index
      %c0_25 = arith.constant 0 : index
      %37 = vector.load %arg11[%c0_24, %c0_25] : memref<1x128xf32, #tpu.memory_space<vmem>>, vector<1x128xf32>
      %38 = arith.mulf %31, %31 : vector<16x128xf32>
      %cst_26 = arith.constant dense<0.000000e+00> : vector<128xf32>
      %39 = vector.multi_reduction <add>, %38, %cst_26 [0] : vector<16x128xf32> to vector<128xf32>
      %40 = vector.shape_cast %39 : vector<128xf32> to vector<1x128xf32>
      %41 = arith.addf %37, %40 : vector<1x128xf32>
      %c0_27 = arith.constant 0 : index
      %c0_28 = arith.constant 0 : index
      %42 = vector.load %arg11[%c0_27, %c0_28] : memref<1x128xf32, #tpu.memory_space<vmem>>, vector<1x128xf32>
      tpu.vector_store %arg11[%c0_27, %c0_28], %41 {strides = array<i32>} : memref<1x128xf32, #tpu.memory_space<vmem>>, vector<1x128xf32>,
      %c3_i32 = arith.constant 3 : i32
      %43 = arith.cmpi eq, %arg1, %c3_i32 : i32
      %44 = arith.extui %43 : i1 to i32
      %c0_i32_29 = arith.constant 0 : i32
      %45 = arith.cmpi ne, %44, %c0_i32_29 : i32
      scf.if %45 {
        %c0_30 = arith.constant 0 : index
        %c0_31 = arith.constant 0 : index
        %46 = vector.load %arg10[%c0_30, %c0_31] : memref<1x128xf32, #tpu.memory_space<vmem>>, vector<1x128xf32>
        %cst_32 = arith.constant 1.562500e-02 : f32
        %47 = vector.broadcast %cst_32 : f32 to vector<1x128xf32>
        %48 = arith.mulf %46, %47 : vector<1x128xf32>
        %c0_33 = arith.constant 0 : index
        %c0_34 = arith.constant 0 : index
        %49 = vector.load %arg11[%c0_33, %c0_34] : memref<1x128xf32, #tpu.memory_space<vmem>>, vector<1x128xf32>
        %cst_35 = arith.constant 1.562500e-02 : f32
        %50 = vector.broadcast %cst_35 : f32 to vector<1x128xf32>
        %51 = arith.mulf %49, %50 : vector<1x128xf32>
        %52 = arith.mulf %48, %48 : vector<1x128xf32>
        %53 = arith.subf %51, %52 : vector<1x128xf32>
        %cst_36 = arith.constant 0.000000e+00 : f32
        %54 = vector.broadcast %cst_36 : f32 to vector<1x128xf32>
        %55 = arith.maximumf %53, %54 : vector<1x128xf32>
        %c0_37 = arith.constant 0 : index
        %c0_38 = arith.constant 0 : index
        %56 = vector.load %arg5[%c0_37, %c0_38] : memref<1x128xf32, #tpu.memory_space<vmem>>, vector<1x128xf32>
        %cst_39 = arith.constant 9.99999974E-6 : f32
        %57 = vector.broadcast %cst_39 : f32 to vector<1x128xf32>
        %58 = arith.addf %55, %57 : vector<1x128xf32>
        %59 = math.rsqrt %58 : vector<1x128xf32>
        %60 = arith.mulf %56, %59 : vector<1x128xf32>
        %c0_40 = arith.constant 0 : index
        %c0_41 = arith.constant 0 : index
        %61 = vector.load %arg12[%c0_40, %c0_41] : memref<1x128xf32, #tpu.memory_space<vmem>>, vector<1x128xf32>
        tpu.vector_store %arg12[%c0_40, %c0_41], %60 {strides = array<i32>} : memref<1x128xf32, #tpu.memory_space<vmem>>, vector<1x128xf32>,
        %c0_42 = arith.constant 0 : index
        %c0_43 = arith.constant 0 : index
        %62 = vector.load %arg6[%c0_42, %c0_43] : memref<1x128xf32, #tpu.memory_space<vmem>>, vector<1x128xf32>
        %63 = arith.mulf %48, %60 : vector<1x128xf32>
        %64 = arith.subf %62, %63 : vector<1x128xf32>
        %c0_44 = arith.constant 0 : index
        %c0_45 = arith.constant 0 : index
        %65 = vector.load %arg13[%c0_44, %c0_45] : memref<1x128xf32, #tpu.memory_space<vmem>>, vector<1x128xf32>
        tpu.vector_store %arg13[%c0_44, %c0_45], %64 {strides = array<i32>} : memref<1x128xf32, #tpu.memory_space<vmem>>, vector<1x128xf32>,
      } else {
      }
    } else {
    }
    %c2_i32 = arith.constant 2 : i32
    %21 = arith.cmpi eq, %arg0, %c2_i32 : i32
    %22 = arith.extui %21 : i1 to i32
    %c0_i32_12 = arith.constant 0 : i32
    %23 = arith.cmpi ne, %22, %c0_i32_12 : i32
    scf.if %23 {
      %24 = arith.truncf %14 : vector<16x128xf32> to vector<16x128xbf16>
      %c0_13 = arith.constant 0 : index
      %c0_14 = arith.constant 0 : index
      %25 = vector.load %arg14[%c0_13, %c0_14] : memref<128x128xbf16, #tpu.memory_space<vmem>>, vector<128x128xbf16>
      %cst_15 = arith.constant dense<0.000000e+00> : vector<16x128xf32>
      %26 = tpu.matmul %24, %25, %cst_15 {dimension_numbers = #tpu.dot_dimension_numbers<[1], [0], [0], [1], [0, 0, 1, 1], [], []>} : vector<16x128xbf16>, vector<128x128xbf16>, vector<16x128xf32> -> vector<16x128xf32>
      %c0_16 = arith.constant 0 : index
      %c0_17 = arith.constant 0 : index
      %27 = vector.load %arg15[%c0_16, %c0_17] : memref<1x128xf32, #tpu.memory_space<vmem>>, vector<1x128xf32>
      %28 = vector.broadcast %27 : vector<1x128xf32> to vector<16x128xf32>
      %29 = arith.addf %26, %28 : vector<16x128xf32>
      %cst_18 = arith.constant 0.000000e+00 : f32
      %30 = vector.broadcast %cst_18 : f32 to vector<16x128xf32>
      %31 = arith.maximumf %29, %30 : vector<16x128xf32>
      %c0_19 = arith.constant 0 : index
      %c0_20 = arith.constant 0 : index
      %32 = vector.load %arg12[%c0_19, %c0_20] : memref<1x128xf32, #tpu.memory_space<vmem>>, vector<1x128xf32>
      %33 = vector.broadcast %32 : vector<1x128xf32> to vector<16x128xf32>
      %34 = arith.mulf %31, %33 : vector<16x128xf32>
      %c0_21 = arith.constant 0 : index
      %c0_22 = arith.constant 0 : index
      %35 = vector.load %arg13[%c0_21, %c0_22] : memref<1x128xf32, #tpu.memory_space<vmem>>, vector<1x128xf32>
      %36 = vector.broadcast %35 : vector<1x128xf32> to vector<16x128xf32>
      %37 = arith.addf %34, %36 : vector<16x128xf32>
      %38 = vector.extract_strided_slice %37 {offsets = [0, 0], sizes = [16, 32], strides = [1, 1]} : vector<16x128xf32> to vector<16x32xf32>
      %c0_23 = arith.constant 0 : index
      %c0_24 = arith.constant 0 : index
      %39 = vector.load %arg7[%c0_23, %c0_24] : memref<16x32xf32, #tpu.memory_space<vmem>>, vector<16x32xf32>
      tpu.vector_store %arg7[%c0_23, %c0_24], %38 {strides = array<i32>} : memref<16x32xf32, #tpu.memory_space<vmem>>, vector<16x32xf32>,
    } else {
    }
    return
  }
  func.func @transform_0(%arg0: i32, %arg1: i32) -> (i32, i32) {
    %c0_i32 = arith.constant 0 : i32
    %c0_i32_0 = arith.constant 0 : i32
    return %arg1, %c0_i32 : i32, i32
  }
  func.func @transform_1(%arg0: i32, %arg1: i32) -> (i32, i32) {
    %c0_i32 = arith.constant 0 : i32
    %c0_i32_0 = arith.constant 0 : i32
    %c0_i32_1 = arith.constant 0 : i32
    return %c0_i32, %c0_i32_0 : i32, i32
  }
  func.func @transform_2(%arg0: i32, %arg1: i32) -> (i32, i32) {
    %c0_i32 = arith.constant 0 : i32
    %c0_i32_0 = arith.constant 0 : i32
    %c0_i32_1 = arith.constant 0 : i32
    return %c0_i32, %c0_i32_0 : i32, i32
  }
  func.func @transform_3(%arg0: i32, %arg1: i32) -> (i32, i32) {
    %c0_i32 = arith.constant 0 : i32
    %c0_i32_0 = arith.constant 0 : i32
    %c0_i32_1 = arith.constant 0 : i32
    return %c0_i32, %c0_i32_0 : i32, i32
  }
  func.func @transform_4(%arg0: i32, %arg1: i32) -> (i32, i32) {
    %c0_i32 = arith.constant 0 : i32
    %c0_i32_0 = arith.constant 0 : i32
    %c0_i32_1 = arith.constant 0 : i32
    return %c0_i32, %c0_i32_0 : i32, i32
  }
  func.func @transform_5(%arg0: i32, %arg1: i32) -> (i32, i32) {
    %c2_i32 = arith.constant 2 : i32
    %0 = arith.cmpi eq, %arg0, %c2_i32 : i32
    %c0_i32 = arith.constant 0 : i32
    %1 = arith.select %0, %arg1, %c0_i32 : i32
    %c0_i32_0 = arith.constant 0 : i32
    %c0_i32_1 = arith.constant 0 : i32
    return %1, %c0_i32_0 : i32, i32
  }
}

</mosaic_0001>

<llo_original>
// kernel: tpu_custom_call.1
$region0: #{tpu_custom_call.1}
  #allocation0 [shape = 'u32[]', space=smem, size = 0x4, offset = 0x4, fixed_abs, tag = 'smem constant byte address 0x4 - core index']
  #allocation1 [shape = 'u32[144,128]{1,0:T(1,128)}', space=vmem, size = 0x12000, scoped, tag = 'internal scratch']
  #allocation2 [shape = 'f32[1,128]{1,0:T(1,128)}', space=vmem, size = 0x200, scoped, tag = 'scratch operand']
  #allocation3 [shape = 'f32[1,128]{1,0:T(1,128)}', space=vmem, size = 0x200, scoped, tag = 'scratch operand']
  #allocation4 [shape = 'f32[1,128]{1,0:T(1,128)}', space=vmem, size = 0x200, scoped, tag = 'scratch operand']
  #allocation5 [shape = 'f32[1,128]{1,0:T(1,128)}', space=vmem, size = 0x200, scoped, tag = 'scratch operand']
  #allocation6 [shape = 'f32[1,128]{1,0:T(1,128)}', space=vmem, size = 0x200, scoped, tag = 'scratch operand']
  #allocation7 [shape = 'f32[1,128]{1,0:T(1,128)}', space=vmem, size = 0x200, scoped, tag = 'scratch operand']
  #allocation8 [shape = 'bf16[128,128]{1,0:T(16,128)(2,1)}', space=vmem, size = 0x8000, scoped, tag = 'scratch operand']
  #allocation9 [shape = 'f32[1,128]{1,0:T(1,128)}', space=vmem, size = 0x200, scoped, tag = 'scratch operand']
  %s0 = inlined_call_operand.vmem [shape: bf16[64,32], index: 0, kind: input, shape index: {}]
  %s1 = inlined_call_operand.vmem [shape: bf16[32,128], index: 1, kind: input, shape index: {}]
  %s2 = inlined_call_operand.hbm [shape: bf16[128,128], index: 2, kind: input, shape index: {}]
  %s3 = inlined_call_operand.vmem [shape: f32[1,128], index: 3, kind: input, shape index: {}]
  %s4 = inlined_call_operand.vmem [shape: f32[1,128], index: 4, kind: input, shape index: {}]
  %s5 = inlined_call_operand.vmem [shape: f32[64,32], index: 5, kind: output, shape index: {}]
  %s6 = sld [smem:[#allocation0]]
  $region85: #{tpu_custom_call.1} parent=0
    _
  %s8 = ssub.s32 1, %s6
  %s9 = scalar_select 0, %s8, %s6
  $region1: #{tpu_custom_call.1} parent=0
    #allocation10 [shape = 'u8[32768]{0}', space=vmem, size = 0x8000, scoped, tag = 'input window, operand 2, single buffered']
    #allocation11 [shape = 's32[2]{0}', space=sflag, size = 0x8, scoped, tag = 'scoped memory for tpu_custom_call.1']
    %10 = vsyncpa [#allocation11], 0
    loop: start=0, step=1, limit=14
    $region2: #{tpu_custom_call.1} parent=1 // loop_pre_header
      _
    $region3: #{tpu_custom_call.1} parent=1 // loop_header
      %s12 = sphi 0, %s16
      %p13 = scmp.ge.s32.totalorder %s12, 14
      %s19 = sphi 0, %s31
      %s20 = sphi 0, %s27
      %s21 = sphi 0, %s19
      %s22 = sphi 0, %s20
      %s23 = sphi 0, %s21
      %s24 = sphi 0, %s22
      %s34 = sphi 0, %s36
      %s37 = sphi 0, %s34
      %s38 = sphi 0, %s37
      %s54 = sphi 0, %s38
      %s58 = sphi 0, %s58
      %s60 = sphi 0, %s58
      %s61 = sphi 0, %s60
      %s75 = sphi 0, %s61
      %s79 = sphi 0, %s79
      %s81 = sphi 0, %s79
      %s82 = sphi 0, %s81
      %s96 = sphi 0, %s82
      %s100 = sphi 0, %s100
      %s102 = sphi 0, %s100
      %s103 = sphi 0, %s102
      %s117 = sphi 0, %s103
      %s121 = sphi 0, %s121
      %s123 = sphi 0, %s121
      %s124 = sphi 0, %s123
      %s138 = sphi 0, %s124
      %s148 = sphi 0, %s150
      %s151 = sphi 0, %s148
      %s152 = sphi 0, %s151
      %s168 = sphi 0, %s152
    $region4: #{tpu_custom_call.1} parent=1 // loop_header_branch
      %15 = sbr.rel (%p13) target = $region8
    $region5: #{tpu_custom_call.1} parent=1 // loop_body
      %s17 = ssub.s32 %s12, 1
      %s18 = ssub.s32 %s12, 2
      %s25 = sadd.s32 1, %s20
      %p26 = scmp.ge.s32.totalorder %s25, 4
      %s27 = scalar_select %p26, 0, %s25
      %s28 = sadd.s32 1, %s19
      %s29 = scalar_select %p26, %s28, %s19
      %p30 = scmp.ge.s32.totalorder %s29, 3
      %s31 = scalar_select %p30, 0, %s29
      %s32 = ssub.s32 %s20, %s27
      %p33 = scmp.eq.s32.totalorder %s32, 0
      %s35 = sadd.s32 %s34, 1
      %s36 = scalar_select %p33, %s34, %s35
      %p39 = pneg %p33
      %p40 = scmp.eq.s32.totalorder %s12, 11
      %p41 = por %p39, %p40
      %p42 = scmp.ne.s32.totalorder %s34, %s37
      %p43 = scmp.eq.s32.totalorder %s12, 0
      %p44 = por %p42, %p43
      %p45 = scmp.ne.s32.totalorder %s34, %s37
      %p46 = scmp.eq.s32.totalorder %s17, 11
      %p47 = por %p45, %p46
      %p48 = scmp.ne.s32.totalorder %s37, %s38
      %p49 = scmp.eq.s32.totalorder %s17, 0
      %p50 = por %p48, %p49
      %p51 = scmp.ne.s32.totalorder %s37, %s38
      %p52 = scmp.eq.s32.totalorder %s18, 11
      %p53 = por %p51, %p52
      %p55 = scmp.ne.s32.totalorder %s38, %s54
      %p56 = scmp.eq.s32.totalorder %s18, 0
      %p57 = por %p55, %p56
      %s59 = sadd.s32 %s58, 1
      %p62 = scmp.eq.s32.totalorder %s12, 11
      %p63 = scmp.ne.s32.totalorder %s58, %s60
      %p64 = scmp.eq.s32.totalorder %s12, 0
      %p65 = por %p63, %p64
      %p66 = scmp.ne.s32.totalorder %s58, %s60
      %p67 = scmp.eq.s32.totalorder %s17, 11
      %p68 = por %p66, %p67
      %p69 = scmp.ne.s32.totalorder %s60, %s61
      %p70 = scmp.eq.s32.totalorder %s17, 0
      %p71 = por %p69, %p70
      %p72 = scmp.ne.s32.totalorder %s60, %s61
      %p73 = scmp.eq.s32.totalorder %s18, 11
      %p74 = por %p72, %p73
      %p76 = scmp.ne.s32.totalorder %s61, %s75
      %p77 = scmp.eq.s32.totalorder %s18, 0
      %p78 = por %p76, %p77
      %s80 = sadd.s32 %s79, 1
      %p83 = scmp.eq.s32.totalorder %s12, 11
      %p84 = scmp.ne.s32.totalorder %s79, %s81
      %p85 = scmp.eq.s32.totalorder %s12, 0
      %p86 = por %p84, %p85
      %p87 = scmp.ne.s32.totalorder %s79, %s81
      %p88 = scmp.eq.s32.totalorder %s17, 11
      %p89 = por %p87, %p88
      %p90 = scmp.ne.s32.totalorder %s81, %s82
      %p91 = scmp.eq.s32.totalorder %s17, 0
      %p92 = por %p90, %p91
      %p93 = scmp.ne.s32.totalorder %s81, %s82
      %p94 = scmp.eq.s32.totalorder %s18, 11
      %p95 = por %p93, %p94
      %p97 = scmp.ne.s32.totalorder %s82, %s96
      %p98 = scmp.eq.s32.totalorder %s18, 0
      %p99 = por %p97, %p98
      %s101 = sadd.s32 %s100, 1
      %p104 = scmp.eq.s32.totalorder %s12, 11
      %p105 = scmp.ne.s32.totalorder %s100, %s102
      %p106 = scmp.eq.s32.totalorder %s12, 0
      %p107 = por %p105, %p106
      %p108 = scmp.ne.s32.totalorder %s100, %s102
      %p109 = scmp.eq.s32.totalorder %s17, 11
      %p110 = por %p108, %p109
      %p111 = scmp.ne.s32.totalorder %s102, %s103
      %p112 = scmp.eq.s32.totalorder %s17, 0
      %p113 = por %p111, %p112
      %p114 = scmp.ne.s32.totalorder %s102, %s103
      %p115 = scmp.eq.s32.totalorder %s18, 11
      %p116 = por %p114, %p115
      %p118 = scmp.ne.s32.totalorder %s103, %s117
      %p119 = scmp.eq.s32.totalorder %s18, 0
      %p120 = por %p118, %p119
      %s122 = sadd.s32 %s121, 1
      %p125 = scmp.eq.s32.totalorder %s12, 11
      %p126 = scmp.ne.s32.totalorder %s121, %s123
      %p127 = scmp.eq.s32.totalorder %s12, 0
      %p128 = por %p126, %p127
      %p129 = scmp.ne.s32.totalorder %s121, %s123
      %p130 = scmp.eq.s32.totalorder %s17, 11
      %p131 = por %p129, %p130
      %p132 = scmp.ne.s32.totalorder %s123, %s124
      %p133 = scmp.eq.s32.totalorder %s17, 0
      %p134 = por %p132, %p133
      %p135 = scmp.ne.s32.totalorder %s123, %s124
      %p136 = scmp.eq.s32.totalorder %s18, 11
      %p137 = por %p135, %p136
      %p139 = scmp.ne.s32.totalorder %s124, %s138
      %p140 = scmp.eq.s32.totalorder %s18, 0
      %p141 = por %p139, %p140
      %p142 = scmp.eq.s32.totalorder %s19, 2
      %s143 = scalar_select %p142, %s20, 0
      %p144 = scmp.eq.s32.totalorder %s31, 2
      %s145 = scalar_select %p144, %s27, 0
      %s146 = ssub.s32 %s143, %s145
      %p147 = scmp.eq.s32.totalorder %s146, 0
      %s149 = sadd.s32 %s148, 1
      %s150 = scalar_select %p147, %s148, %s149
      %p153 = pneg %p147
      %p154 = scmp.eq.s32.totalorder %s12, 11
      %p155 = por %p153, %p154
      %p156 = scmp.ne.s32.totalorder %s148, %s151
      %p157 = scmp.eq.s32.totalorder %s12, 0
      %p158 = por %p156, %p157
      %p159 = scmp.ne.s32.totalorder %s148, %s151
      %p160 = scmp.eq.s32.totalorder %s17, 11
      %p161 = por %p159, %p160
      %p162 = scmp.ne.s32.totalorder %s151, %s152
      %p163 = scmp.eq.s32.totalorder %s17, 0
      %p164 = por %p162, %p163
      %p165 = scmp.ne.s32.totalorder %s151, %s152
      %p166 = scmp.eq.s32.totalorder %s18, 11
      %p167 = por %p165, %p166
      %p169 = scmp.ne.s32.totalorder %s152, %s168
      %p170 = scmp.eq.s32.totalorder %s18, 0
      %p171 = por %p169, %p170
      %p172 = scmp.le.s32.totalorder 1, %s12
      %p173 = scmp.lt.s32.totalorder %s12, 13
      %p174 = pnand %p172, %p173
      %p175 = pneg %p174
      // Predicated region
      $region9: #{tpu_custom_call.1} parent=5 // pred_check
        _
      $region10: #{tpu_custom_call.1} parent=5 // pred_check_branch
        %177 = sbr.rel (%p174) target = $region12
      $region11: #{tpu_custom_call.1} parent=5 // pred_region
        %s178 = ssub.s32 %s12, 1
        // Predicated region
        $region13: #{tpu_custom_call.1} parent=11 // pred_check
          %p179 = pneg %p71
        $region14: #{tpu_custom_call.1} parent=11 // pred_check_branch
          %181 = sbr.rel (%p179) target = $region16
        $region15: #{tpu_custom_call.1} parent=11 // pred_region
          _
        $region16: #{tpu_custom_call.1} parent=11 // pred_fallthru
          _
        // Predicated region
        $region17: #{tpu_custom_call.1} parent=11 // pred_check
          %p182 = pneg %p92
        $region18: #{tpu_custom_call.1} parent=11 // pred_check_branch
          %184 = sbr.rel (%p182) target = $region20
        $region19: #{tpu_custom_call.1} parent=11 // pred_region
          %s186 = ssub.s32 1024, 1024
          %187 = vsyncadd [#allocation11], %s186
          %s188 = sshll.u32 [#allocation10], 4
          %s189 = int_to_ptr.vmem [resolvable:$true] %s188
          %194 = dma.hbm_to_vmem [thread:$0]  %s2, 1024, %s189, [#allocation11], 64, 64, 4
        $region20: #{tpu_custom_call.1} parent=11 // pred_fallthru
          _
        // Predicated region
        $region21: #{tpu_custom_call.1} parent=11 // pred_check
          %p195 = pneg %p113
        $region22: #{tpu_custom_call.1} parent=11 // pred_check_branch
          %197 = sbr.rel (%p195) target = $region24
        $region23: #{tpu_custom_call.1} parent=11 // pred_region
          _
        $region24: #{tpu_custom_call.1} parent=11 // pred_fallthru
          _
        // Predicated region
        $region25: #{tpu_custom_call.1} parent=11 // pred_check
          %p198 = pneg %p134
        $region26: #{tpu_custom_call.1} parent=11 // pred_check_branch
          %200 = sbr.rel (%p198) target = $region28
        $region27: #{tpu_custom_call.1} parent=11 // pred_region
          _
        $region28: #{tpu_custom_call.1} parent=11 // pred_fallthru
          _
      $region12: #{tpu_custom_call.1} parent=5 // pred_fallthru
        _
      %p201 = scmp.lt.s32.totalorder %s12, 12
      // Predicated region
      $region29: #{tpu_custom_call.1} parent=5 // pred_check
        %p202 = pneg %p201
      $region30: #{tpu_custom_call.1} parent=5 // pred_check_branch
        %204 = sbr.rel (%p202) target = $region32
      $region31: #{tpu_custom_call.1} parent=5 // pred_region
        // Predicated region
        $region33: #{tpu_custom_call.1} parent=31 // pred_check
          %p205 = pneg %p44
        $region34: #{tpu_custom_call.1} parent=31 // pred_check_branch
          %207 = sbr.rel (%p205) target = $region36
        $region35: #{tpu_custom_call.1} parent=31 // pred_region
          %s208 = smul.u32 2, %s20
          %p209 = scmp.lt.s32.totalorder %s208, 7
          %s210 = scalar_select %p209, %s208, 7
          %s211 = smul.addr %s210, 4
          %s212 = scalar_lea.vmem %s0, %s211
          %s213 = smul.u32 2, %s20
        $region36: #{tpu_custom_call.1} parent=31 // pred_fallthru
          _
      $region32: #{tpu_custom_call.1} parent=5 // pred_fallthru
        _
      %p214 = scmp.le.s32.totalorder 1, %s12
      %p215 = scmp.lt.s32.totalorder %s12, 13
      %p216 = pnand %p214, %p215
      %p217 = pneg %p216
      // Predicated region
      $region37: #{tpu_custom_call.1} parent=5 // pred_check
        _
      $region38: #{tpu_custom_call.1} parent=5 // pred_check_branch
        %219 = sbr.rel (%p216) target = $region40
      $region39: #{tpu_custom_call.1} parent=5 // pred_region
        %s220 = ssub.s32 %s12, 1
        // Predicated region
        $region41: #{tpu_custom_call.1} parent=39 // pred_check
          %p221 = pneg %p92
        $region42: #{tpu_custom_call.1} parent=39 // pred_check_branch
          %223 = sbr.rel (%p221) target = $region44
        $region43: #{tpu_custom_call.1} parent=39 // pred_region
          %224 = dma.done [#allocation11], 1024
        $region44: #{tpu_custom_call.1} parent=39 // pred_fallthru
          _
        %s225 = smul.u32 2, %s22
        %p226 = scmp.lt.s32.totalorder %s225, 7
        %s227 = scalar_select %p226, %s225, 7
        %s228 = smul.addr %s227, 4
        %s229 = scalar_lea.vmem %s0, %s228
        %p230 = pneg %p50
        %p231 = pneg %p47
        %p232 = pneg %p71
        %p233 = pneg %p68
        %p234 = pneg %p92
        %p235 = pneg %p89
        %p236 = pneg %p113
        %p237 = pneg %p110
        %p238 = pneg %p134
        %p239 = pneg %p131
        %p240 = pneg %p164
        %p241 = pneg %p161
        %p242 = scmp.eq.s32.totalorder %s21, 2
        %s243 = scalar_select %p242, %s22, 0
        %s244 = smul.u32 2, %s243
        %p245 = scmp.lt.s32.totalorder %s244, 7
        %s246 = scalar_select %p245, %s244, 7
        %s247 = smul.addr %s246, 8
        %s248 = scalar_lea.vmem %s5, %s247
        %s249 = smul.u32 2, %s22
        %p250 = scmp.lt.s32.totalorder %s249, 7
        %s251 = scalar_select %p250, %s249, 7
        %s252 = smul.addr %s251, 4
        %s253 = scalar_lea.vmem %s0, %s252
        %s254 = smul.u32 2, %s22
        %p255 = scmp.eq.s32.totalorder %s21, 2
        %s256 = scalar_select %p255, %s22, 0
        %s257 = smul.u32 2, %s256
        %p258 = scmp.lt.s32.totalorder %s257, 7
        %s259 = scalar_select %p258, %s257, 7
        %s260 = smul.addr %s259, 8
        %s261 = scalar_lea.vmem %s5, %s260
        %p262 = scmp.eq.s32.totalorder %s21, 2
        %s263 = scalar_select %p262, %s22, 0
        %s264 = smul.u32 2, %s263
        %p266 = scmp.eq.s32.totalorder %s21, 0
        %p267 = scmp.eq.s32.totalorder %s22, 0
        %p268 = pnand %p266, %p267
        %p269 = pneg %p268
        // Predicated region
        $region45: #{tpu_custom_call.1} parent=39 // pred_check
          _
        $region46: #{tpu_custom_call.1} parent=39 // pred_check_branch
          %271 = sbr.rel (%p268) target = $region48
        $region47: #{tpu_custom_call.1} parent=39 // pred_region
          %272 = vst [vmem:[#allocation2] sm:$0x1] 0.0
          %273 = vst [vmem:[#allocation3] sm:$0x1] 0.0
        $region48: #{tpu_custom_call.1} parent=39 // pred_fallthru
          _
        %p274 = scmp.eq.s32.totalorder %s21, 1
        %p275 = pnand %p274, %p267
        %p276 = pneg %p275
        // Predicated region
        $region49: #{tpu_custom_call.1} parent=39 // pred_check
          _
        $region50: #{tpu_custom_call.1} parent=39 // pred_check_branch
          %278 = sbr.rel (%p275) target = $region52
        $region51: #{tpu_custom_call.1} parent=39 // pred_region
          %279 = vst [vmem:[#allocation4] sm:$0x1] 0.0
          %280 = vst [vmem:[#allocation5] sm:$0x1] 0.0
        $region52: #{tpu_custom_call.1} parent=39 // pred_fallthru
          _
        %v281 = vld [vmem:[%s253] sm:$0xf]
        %v282 = vld [vmem:[%s253 + $0x4] sm:$0xf]
        %v283 = vld [vmem:[%s1] sm:$0xf]
        %v284 = vld [vmem:[%s1 + $0x4] sm:$0xf]
        %v285 = vld [vmem:[%s1 + $0x8] sm:$0xf]
        %v286 = vld [vmem:[%s1 + $0xc] sm:$0xf]
        %v289 = vunpack.c.l.b16 %v281
        %v290 = vunpack.c.l.b16 %v282
        %v291 = vpack.c.b16 %v290, %v289
        %v296 = vunpack.c.l.b16 %v283
        %v297 = vunpack.c.l.b16 %v284
        %v298 = vunpack.c.l.b16 %v285
        %v299 = vunpack.c.l.b16 %v286
        %v300 = vpack.c.b16 %v297, %v296
        %v301 = vpack.c.b16 %v299, %v298
        %vm304 = vcmask 261120
        %v306 = vsel %vm304, %v291, 0
        %308 = vmatprep.subr.bf16.mxu0 0
        %309 = vmatpush1.bf16.msra.mxu0 %v300
        %310 = vmatprep.subr.bf16.mxu0 0
        %311 = vmatpush1.bf16.msra.mxu0 %v301
        %312 = vmatprep.subr.bf16.mxu0 0
        %313 = vmatpush1.bf16.msra.mxu0 0
        %314 = vmatprep.subr.bf16.mxu0 0
        %315 = vmatpush1.bf16.msra.mxu0 0
        %316 = vmatprep.subr.bf16.mxu0 0
        %317 = vmatpush1.bf16.msra.mxu0 0
        %318 = vmatprep.subr.bf16.mxu0 0
        %319 = vmatpush1.bf16.msra.mxu0 0
        %320 = vmatprep.subr.bf16.mxu0 0
        %321 = vmatpush1.bf16.msra.mxu0 0
        %322 = vmatprep.subr.bf16.mxu0 0
        %323 = vmatpush1.bf16.msra.mxu0 0
        %324 = vmatprep.subr.bf16.mxu0 0
        %325 = vmatpush1.bf16.msra.mxu0 0
        %326 = vmatprep.subr.bf16.mxu0 0
        %327 = vmatpush1.bf16.msra.mxu0 0
        %328 = vmatprep.subr.bf16.mxu0 0
        %329 = vmatpush1.bf16.msra.mxu0 0
        %330 = vmatprep.subr.bf16.mxu0 0
        %331 = vmatpush1.bf16.msra.mxu0 0
        %332 = vmatprep.subr.bf16.mxu0 0
        %333 = vmatpush1.bf16.msra.mxu0 0
        %334 = vmatprep.subr.bf16.mxu0 0
        %335 = vmatpush1.bf16.msra.mxu0 0
        %336 = vmatprep.subr.bf16.mxu0 0
        %337 = vmatpush1.bf16.msra.mxu0 0
        %338 = vmatprep.subr.bf16.mxu0 0
        %339 = vmatpush1.bf16.msra.mxu0 0
        %340 = vmatprep.mubr.bf16.mxu0 0
        %341 = vmatmul.mubr.bf16.gmra.mrb[0].mxu0 %v306
        %v342 = vpop.f32.mrb[0].mxu0
        %v343 = vadd.f32 0.0, %v342
        %v344 = vpop.f32.mrb[0].mxu0
        %v345 = vpop.f32.mrb[0].mxu0
        %v346 = vadd.f32 0.0, %v345
        %v347 = vpop.f32.mrb[0].mxu0
        %348 = vdwg.mxu0
        %v349 = vmax.f32 %v343, 0.0
        %v350 = vmax.f32 %v346, 0.0
        // Predicated region
        $region53: #{tpu_custom_call.1} parent=39 // pred_check
          %p351 = pneg %p266
        $region54: #{tpu_custom_call.1} parent=39 // pred_check_branch
          %353 = sbr.rel (%p351) target = $region56
        $region55: #{tpu_custom_call.1} parent=39 // pred_region
          %v354 = vld [vmem:[#allocation2] sm:$0x1]
          %v355 = vadd.f32 %v349, %v350
          %v356 = vrot.slane %v355, 4
          %v357 = vadd.f32 %v355, %v356
          %v358 = vrot.slane %v357, 2
          %v359 = vadd.f32 %v357, %v358
          %v360 = vrot.slane %v359, 1
          %v361 = vadd.f32 %v359, %v360
          %v362 = vadd.f32 %v354, %v361
          %363 = vst [vmem:[#allocation2] sm:$0x1] %v362
          %v364 = vld [vmem:[#allocation3] sm:$0x1]
          %v365 = vmul.f32 %v349, %v349
          %v366 = vmul.f32 %v350, %v350
          %v367 = vadd.f32 %v365, %v366
          %v368 = vrot.slane %v367, 4
          %v369 = vadd.f32 %v367, %v368
          %v370 = vrot.slane %v369, 2
          %v371 = vadd.f32 %v369, %v370
          %v372 = vrot.slane %v371, 1
          %v373 = vadd.f32 %v371, %v372
          %v374 = vadd.f32 %v364, %v373
          %375 = vst [vmem:[#allocation3] sm:$0x1] %v374
          %p376 = scmp.eq.s32.totalorder %s22, 3
          // Predicated region
          $region57: #{tpu_custom_call.1} parent=55 // pred_check
            %p377 = pneg %p376
          $region58: #{tpu_custom_call.1} parent=55 // pred_check_branch
            %379 = sbr.rel (%p377) target = $region60
          $region59: #{tpu_custom_call.1} parent=55 // pred_region
            %v380 = vld [vmem:[#allocation2] sm:$0x1]
            %v381 = vmul.f32 %v380, 0.015625
            %v382 = vld [vmem:[#allocation3] sm:$0x1]
            %v383 = vmul.f32 %v382, 0.015625
            %v384 = vmul.f32 %v381, %v381
            %v385 = vsub.f32 %v383, %v384
            %v386 = vmax.f32 %v385, 0.0
            %v387 = vld [vmem:[%s3] sm:$0x1]
            %v388 = vadd.f32 %v386, 1e-05
            %v389 = vrsqrt.pop %v388
            %v390 = vmul.f32 %v387, %v389
            %v391 = vld [vmem:[%s4] sm:$0x1]
            %v392 = vmul.f32 %v381, %v390
            %v393 = vsub.f32 %v391, %v392
            %v394 = vld [vmem:[#allocation10] sm:$0xf]
            %v395 = vld [vmem:[#allocation10 + $0x4] sm:$0xf]
            %v396 = vld [vmem:[#allocation10 + $0x8] sm:$0xf]
            %v397 = vld [vmem:[#allocation10 + $0xc] sm:$0xf]
            %v398 = vld [vmem:[#allocation10 + $0x10] sm:$0xf]
            %v399 = vld [vmem:[#allocation10 + $0x14] sm:$0xf]
            %v400 = vld [vmem:[#allocation10 + $0x18] sm:$0xf]
            %v401 = vld [vmem:[#allocation10 + $0x1c] sm:$0xf]
            %v402 = vld [vmem:[#allocation10 + $0x20] sm:$0xf]
            %v403 = vld [vmem:[#allocation10 + $0x24] sm:$0xf]
            %v404 = vld [vmem:[#allocation10 + $0x28] sm:$0xf]
            %v405 = vld [vmem:[#allocation10 + $0x2c] sm:$0xf]
            %v406 = vld [vmem:[#allocation10 + $0x30] sm:$0xf]
            %v407 = vld [vmem:[#allocation10 + $0x34] sm:$0xf]
            %v408 = vld [vmem:[#allocation10 + $0x38] sm:$0xf]
            %v409 = vld [vmem:[#allocation10 + $0x3c] sm:$0xf]
            %v410 = vunpack.c.l.bf16 %v394
            %v411 = vunpack.c.l.bf16 %v395
            %v412 = vunpack.c.l.bf16 %v396
            %v413 = vunpack.c.l.bf16 %v397
            %v414 = vunpack.c.l.bf16 %v398
            %v415 = vunpack.c.l.bf16 %v399
            %v416 = vunpack.c.l.bf16 %v400
            %v417 = vunpack.c.l.bf16 %v401
            %v418 = vunpack.c.l.bf16 %v402
            %v419 = vunpack.c.l.bf16 %v403
            %v420 = vunpack.c.l.bf16 %v404
            %v421 = vunpack.c.l.bf16 %v405
            %v422 = vunpack.c.l.bf16 %v406
            %v423 = vunpack.c.l.bf16 %v407
            %v424 = vunpack.c.l.bf16 %v408
            %v425 = vunpack.c.l.bf16 %v409
            %v426 = vlaneseq
            %v427 = vshrl.u32 %v426, 7
            %v428 = vadd.s32 %v427, 8
            %v429 = vadd.s32 %v427, 16
            %v430 = vadd.s32 %v427, 24
            %v431 = vadd.s32 %v427, 32
            %v432 = vadd.s32 %v427, 40
            %v433 = vadd.s32 %v427, 48
            %v434 = vadd.s32 %v427, 56
            %v435 = vadd.s32 %v427, 64
            %v436 = vadd.s32 %v427, 72
            %v437 = vadd.s32 %v427, 80
            %v438 = vadd.s32 %v427, 88
            %v439 = vadd.s32 %v427, 96
            %v440 = vadd.s32 %v427, 104
            %v441 = vadd.s32 %v427, 112
            %v442 = vadd.s32 %v427, 120
            %v443 = vlaneseq
            %v444 = vand.u32 %v443, 127
            %vm445 = vcmp.eq.s32.totalorder %v427, %v444
            %vm446 = vcmp.eq.s32.totalorder %v428, %v444
            %vm447 = vcmp.eq.s32.totalorder %v429, %v444
            %vm448 = vcmp.eq.s32.totalorder %v430, %v444
            %vm449 = vcmp.eq.s32.totalorder %v431, %v444
            %vm450 = vcmp.eq.s32.totalorder %v432, %v444
            %vm451 = vcmp.eq.s32.totalorder %v433, %v444
            %vm452 = vcmp.eq.s32.totalorder %v434, %v444
            %vm453 = vcmp.eq.s32.totalorder %v435, %v444
            %vm454 = vcmp.eq.s32.totalorder %v436, %v444
            %vm455 = vcmp.eq.s32.totalorder %v437, %v444
            %vm456 = vcmp.eq.s32.totalorder %v438, %v444
            %vm457 = vcmp.eq.s32.totalorder %v439, %v444
            %vm458 = vcmp.eq.s32.totalorder %v440, %v444
            %vm459 = vcmp.eq.s32.totalorder %v441, %v444
            %vm460 = vcmp.eq.s32.totalorder %v442, %v444
            %v462 = vlaneseq
            %v463 = vshrl.u32 %v462, 7
            %v464 = vsub.s32 0, %v463
            %v465 = vrot.slane %v390, %v464
            %v467 = vsel %vm445, %v465, 0.0
            %v468 = vsel %vm446, %v465, 0.0
            %v469 = vsel %vm447, %v465, 0.0
            %v470 = vsel %vm448, %v465, 0.0
            %v471 = vsel %vm449, %v465, 0.0
            %v472 = vsel %vm450, %v465, 0.0
            %v473 = vsel %vm451, %v465, 0.0
            %v474 = vsel %vm452, %v465, 0.0
            %v475 = vsel %vm453, %v465, 0.0
            %v476 = vsel %vm454, %v465, 0.0
            %v477 = vsel %vm455, %v465, 0.0
            %v478 = vsel %vm456, %v465, 0.0
            %v479 = vsel %vm457, %v465, 0.0
            %v480 = vsel %vm458, %v465, 0.0
            %v481 = vsel %vm459, %v465, 0.0
            %v482 = vsel %vm460, %v465, 0.0
            %v484 = vlaneseq
            %v485 = vshrl.u32 %v484, 7
            %v486 = vsub.s32 0, %v485
            %v487 = vrot.slane %v393, %v486
            %v489 = vsel %vm445, %v487, 0.0
            %v490 = vsel %vm446, %v487, 0.0
            %v491 = vsel %vm447, %v487, 0.0
            %v492 = vsel %vm448, %v487, 0.0
            %v493 = vsel %vm449, %v487, 0.0
            %v494 = vsel %vm450, %v487, 0.0
            %v495 = vsel %vm451, %v487, 0.0
            %v496 = vsel %vm452, %v487, 0.0
            %v497 = vsel %vm453, %v487, 0.0
            %v498 = vsel %vm454, %v487, 0.0
            %v499 = vsel %vm455, %v487, 0.0
            %v500 = vsel %vm456, %v487, 0.0
            %v501 = vsel %vm457, %v487, 0.0
            %v502 = vsel %vm458, %v487, 0.0
            %v503 = vsel %vm459, %v487, 0.0
            %v504 = vsel %vm460, %v487, 0.0
            %505 = vmatprep.subr.mxu0 0.0
            %506 = vmatpush1.msra.mxu0 %v410
            %507 = vmatprep.subr.mxu0 0.0
            %508 = vmatpush1.msra.mxu0 %v411
            %509 = vmatprep.subr.mxu0 0.0
            %510 = vmatpush1.msra.mxu0 %v412
            %511 = vmatprep.subr.mxu0 0.0
            %512 = vmatpush1.msra.mxu0 %v413
            %513 = vmatprep.subr.mxu0 0.0
            %514 = vmatpush1.msra.mxu0 %v414
            %515 = vmatprep.subr.mxu0 0.0
            %516 = vmatpush1.msra.mxu0 %v415
            %517 = vmatprep.subr.mxu0 0.0
            %518 = vmatpush1.msra.mxu0 %v416
            %519 = vmatprep.subr.mxu0 0.0
            %520 = vmatpush1.msra.mxu0 %v417
            %521 = vmatprep.subr.mxu0 0.0
            %522 = vmatpush1.msra.mxu0 %v418
            %523 = vmatprep.subr.mxu0 0.0
            %524 = vmatpush1.msra.mxu0 %v419
            %525 = vmatprep.subr.mxu0 0.0
            %526 = vmatpush1.msra.mxu0 %v420
            %527 = vmatprep.subr.mxu0 0.0
            %528 = vmatpush1.msra.mxu0 %v421
            %529 = vmatprep.subr.mxu0 0.0
            %530 = vmatpush1.msra.mxu0 %v422
            %531 = vmatprep.subr.mxu0 0.0
            %532 = vmatpush1.msra.mxu0 %v423
            %533 = vmatprep.subr.mxu0 0.0
            %534 = vmatpush1.msra.mxu0 %v424
            %535 = vmatprep.subr.mxu0 0.0
            %536 = vmatpush1.msra.mxu0 %v425
            %537 = vmatprep.subr.mxu0 0.0
            %538 = vmatpush1.msra.mxu0 0.0
            %539 = vmatprep.subr.mxu0 0.0
            %540 = vmatpush1.msra.mxu0 0.0
            %541 = vmatprep.subr.mxu0 0.0
            %542 = vmatpush1.msra.mxu0 0.0
            %543 = vmatprep.subr.mxu0 0.0
            %544 = vmatpush1.msra.mxu0 0.0
            %545 = vmatprep.subr.mxu0 0.0
            %546 = vmatpush1.msra.mxu0 0.0
            %547 = vmatprep.subr.mxu0 0.0
            %548 = vmatpush1.msra.mxu0 0.0
            %549 = vmatprep.subr.mxu0 0.0
            %550 = vmatpush1.msra.mxu0 0.0
            %551 = vmatprep.subr.mxu0 0.0
            %552 = vmatpush1.msra.mxu0 0.0
            %553 = vmatprep.subr.mxu0 0.0
            %554 = vmatpush1.msra.mxu0 0.0
            %555 = vmatprep.subr.mxu0 0.0
            %556 = vmatpush1.msra.mxu0 0.0
            %557 = vmatprep.subr.mxu0 0.0
            %558 = vmatpush1.msra.mxu0 0.0
            %559 = vmatprep.subr.mxu0 0.0
            %560 = vmatpush1.msra.mxu0 0.0
            %561 = vmatprep.subr.mxu0 0.0
            %562 = vmatpush1.msra.mxu0 0.0
            %563 = vmatprep.subr.mxu0 0.0
            %564 = vmatpush1.msra.mxu0 0.0
            %565 = vmatprep.subr.mxu0 0.0
            %566 = vmatpush1.msra.mxu0 0.0
            %567 = vmatprep.subr.mxu0 0.0
            %568 = vmatpush1.msra.mxu0 0.0
            %569 = vmatprep.mubr.f32.mxu0 0.0
            %570 = vmatmul.mubr.f32.gmra.mrb[0].mxu0 %v467
            %v571 = vpop.f32.mrb[0].mxu0
            %v572 = vadd.f32 0.0, %v571
            %v573 = vpop.f32.mrb[0].mxu0
            %574 = vmatprep.mubr.f32.mxu0 0.0
            %575 = vmatmul.mubr.f32.gmra.mrb[0].mxu0 %v468
            %v576 = vpop.f32.mrb[0].mxu0
            %v577 = vadd.f32 0.0, %v576
            %v578 = vpop.f32.mrb[0].mxu0
            %579 = vmatprep.mubr.f32.mxu0 0.0
            %580 = vmatmul.mubr.f32.gmra.mrb[0].mxu0 %v469
            %v581 = vpop.f32.mrb[0].mxu0
            %v582 = vadd.f32 0.0, %v581
            %v583 = vpop.f32.mrb[0].mxu0
            %584 = vmatprep.mubr.f32.mxu0 0.0
            %585 = vmatmul.mubr.f32.gmra.mrb[0].mxu0 %v470
            %v586 = vpop.f32.mrb[0].mxu0
            %v587 = vadd.f32 0.0, %v586
            %v588 = vpop.f32.mrb[0].mxu0
            %589 = vmatprep.mubr.f32.mxu0 0.0
            %590 = vmatmul.mubr.f32.gmra.mrb[0].mxu0 %v471
            %v591 = vpop.f32.mrb[0].mxu0
            %v592 = vadd.f32 0.0, %v591
            %v593 = vpop.f32.mrb[0].mxu0
            %594 = vmatprep.mubr.f32.mxu0 0.0
            %595 = vmatmul.mubr.f32.gmra.mrb[0].mxu0 %v472
            %v596 = vpop.f32.mrb[0].mxu0
            %v597 = vadd.f32 0.0, %v596
            %v598 = vpop.f32.mrb[0].mxu0
            %599 = vmatprep.mubr.f32.mxu0 0.0
            %600 = vmatmul.mubr.f32.gmra.mrb[0].mxu0 %v473
            %v601 = vpop.f32.mrb[0].mxu0
            %v602 = vadd.f32 0.0, %v601
            %v603 = vpop.f32.mrb[0].mxu0
            %604 = vmatprep.mubr.f32.mxu0 0.0
            %605 = vmatmul.mubr.f32.gmra.mrb[0].mxu0 %v474
            %v606 = vpop.f32.mrb[0].mxu0
            %v607 = vadd.f32 0.0, %v606
            %v608 = vpop.f32.mrb[0].mxu0
            %609 = vmatprep.mubr.f32.mxu0 0.0
            %610 = vmatmul.mubr.f32.gmra.mrb[0].mxu0 %v475
            %v611 = vpop.f32.mrb[0].mxu0
            %v612 = vadd.f32 0.0, %v611
            %v613 = vpop.f32.mrb[0].mxu0
            %614 = vmatprep.mubr.f32.mxu0 0.0
            %615 = vmatmul.mubr.f32.gmra.mrb[0].mxu0 %v476
            %v616 = vpop.f32.mrb[0].mxu0
            %v617 = vadd.f32 0.0, %v616
            %v618 = vpop.f32.mrb[0].mxu0
            %619 = vmatprep.mubr.f32.mxu0 0.0
            %620 = vmatmul.mubr.f32.gmra.mrb[0].mxu0 %v477
            %v621 = vpop.f32.mrb[0].mxu0
            %v622 = vadd.f32 0.0, %v621
            %v623 = vpop.f32.mrb[0].mxu0
            %624 = vmatprep.mubr.f32.mxu0 0.0
            %625 = vmatmul.mubr.f32.gmra.mrb[0].mxu0 %v478
            %v626 = vpop.f32.mrb[0].mxu0
            %v627 = vadd.f32 0.0, %v626
            %v628 = vpop.f32.mrb[0].mxu0
            %629 = vmatprep.mubr.f32.mxu0 0.0
            %630 = vmatmul.mubr.f32.gmra.mrb[0].mxu0 %v479
            %v631 = vpop.f32.mrb[0].mxu0
            %v632 = vadd.f32 0.0, %v631
            %v633 = vpop.f32.mrb[0].mxu0
            %634 = vmatprep.mubr.f32.mxu0 0.0
            %635 = vmatmul.mubr.f32.gmra.mrb[0].mxu0 %v480
            %v636 = vpop.f32.mrb[0].mxu0
            %v637 = vadd.f32 0.0, %v636
            %v638 = vpop.f32.mrb[0].mxu0
            %639 = vmatprep.mubr.f32.mxu0 0.0
            %640 = vmatmul.mubr.f32.gmra.mrb[0].mxu0 %v481
            %v641 = vpop.f32.mrb[0].mxu0
            %v642 = vadd.f32 0.0, %v641
            %v643 = vpop.f32.mrb[0].mxu0
            %644 = vmatprep.mubr.f32.mxu0 0.0
            %645 = vmatmul.mubr.f32.gmra.mrb[0].mxu0 %v482
            %v646 = vpop.f32.mrb[0].mxu0
            %v647 = vadd.f32 0.0, %v646
            %v648 = vpop.f32.mrb[0].mxu0
            %649 = vdwg.mxu0
            %v650 = vpack.c.bf16 %v577, %v572
            %v651 = vpack.c.bf16 %v587, %v582
            %v652 = vpack.c.bf16 %v597, %v592
            %v653 = vpack.c.bf16 %v607, %v602
            %v654 = vpack.c.bf16 %v617, %v612
            %v655 = vpack.c.bf16 %v627, %v622
            %v656 = vpack.c.bf16 %v637, %v632
            %v657 = vpack.c.bf16 %v647, %v642
            %658 = vst [vmem:[#allocation8] sm:$0xff] %v650
            %659 = vst [vmem:[#allocation8 + $0x8] sm:$0xff] %v651
            %660 = vst [vmem:[#allocation8 + $0x10] sm:$0xff] %v652
            %661 = vst [vmem:[#allocation8 + $0x18] sm:$0xff] %v653
            %662 = vst [vmem:[#allocation8 + $0x20] sm:$0xff] %v654
            %663 = vst [vmem:[#allocation8 + $0x28] sm:$0xff] %v655
            %664 = vst [vmem:[#allocation8 + $0x30] sm:$0xff] %v656
            %665 = vst [vmem:[#allocation8 + $0x38] sm:$0xff] %v657
            %666 = vmatprep.subr.mxu0 0.0
            %667 = vmatpush1.msra.mxu0 %v410
            %668 = vmatprep.subr.mxu0 0.0
            %669 = vmatpush1.msra.mxu0 %v411
            %670 = vmatprep.subr.mxu0 0.0
            %671 = vmatpush1.msra.mxu0 %v412
            %672 = vmatprep.subr.mxu0 0.0
            %673 = vmatpush1.msra.mxu0 %v413
            %674 = vmatprep.subr.mxu0 0.0
            %675 = vmatpush1.msra.mxu0 %v414
            %676 = vmatprep.subr.mxu0 0.0
            %677 = vmatpush1.msra.mxu0 %v415
            %678 = vmatprep.subr.mxu0 0.0
            %679 = vmatpush1.msra.mxu0 %v416
            %680 = vmatprep.subr.mxu0 0.0
            %681 = vmatpush1.msra.mxu0 %v417
            %682 = vmatprep.subr.mxu0 0.0
            %683 = vmatpush1.msra.mxu0 %v418
            %684 = vmatprep.subr.mxu0 0.0
            %685 = vmatpush1.msra.mxu0 %v419
            %686 = vmatprep.subr.mxu0 0.0
            %687 = vmatpush1.msra.mxu0 %v420
            %688 = vmatprep.subr.mxu0 0.0
            %689 = vmatpush1.msra.mxu0 %v421
            %690 = vmatprep.subr.mxu0 0.0
            %691 = vmatpush1.msra.mxu0 %v422
            %692 = vmatprep.subr.mxu0 0.0
            %693 = vmatpush1.msra.mxu0 %v423
            %694 = vmatprep.subr.mxu0 0.0
            %695 = vmatpush1.msra.mxu0 %v424
            %696 = vmatprep.subr.mxu0 0.0
            %697 = vmatpush1.msra.mxu0 %v425
            %698 = vmatprep.subr.mxu0 0.0
            %699 = vmatpush1.msra.mxu0 0.0
            %700 = vmatprep.subr.mxu0 0.0
            %701 = vmatpush1.msra.mxu0 0.0
            %702 = vmatprep.subr.mxu0 0.0
            %703 = vmatpush1.msra.mxu0 0.0
            %704 = vmatprep.subr.mxu0 0.0
            %705 = vmatpush1.msra.mxu0 0.0
            %706 = vmatprep.subr.mxu0 0.0
            %707 = vmatpush1.msra.mxu0 0.0
            %708 = vmatprep.subr.mxu0 0.0
            %709 = vmatpush1.msra.mxu0 0.0
            %710 = vmatprep.subr.mxu0 0.0
            %711 = vmatpush1.msra.mxu0 0.0
            %712 = vmatprep.subr.mxu0 0.0
            %713 = vmatpush1.msra.mxu0 0.0
            %714 = vmatprep.subr.mxu0 0.0
            %715 = vmatpush1.msra.mxu0 0.0
            %716 = vmatprep.subr.mxu0 0.0
            %717 = vmatpush1.msra.mxu0 0.0
            %718 = vmatprep.subr.mxu0 0.0
            %719 = vmatpush1.msra.mxu0 0.0
            %720 = vmatprep.subr.mxu0 0.0
            %721 = vmatpush1.msra.mxu0 0.0
            %722 = vmatprep.subr.mxu0 0.0
            %723 = vmatpush1.msra.mxu0 0.0
            %724 = vmatprep.subr.mxu0 0.0
            %725 = vmatpush1.msra.mxu0 0.0
            %726 = vmatprep.subr.mxu0 0.0
            %727 = vmatpush1.msra.mxu0 0.0
            %728 = vmatprep.subr.mxu0 0.0
            %729 = vmatpush1.msra.mxu0 0.0
            %730 = vmatprep.mubr.f32.mxu0 0.0
            %731 = vmatmul.mubr.f32.gmra.mrb[0].mxu0 %v489
            %v732 = vpop.f32.mrb[0].mxu0
            %v733 = vadd.f32 0.0, %v732
            %v734 = vpop.f32.mrb[0].mxu0
            %735 = vmatprep.mubr.f32.mxu0 0.0
            %736 = vmatmul.mubr.f32.gmra.mrb[0].mxu0 %v490
            %v737 = vpop.f32.mrb[0].mxu0
            %v738 = vadd.f32 0.0, %v737
            %v739 = vpop.f32.mrb[0].mxu0
            %740 = vmatprep.mubr.f32.mxu0 0.0
            %741 = vmatmul.mubr.f32.gmra.mrb[0].mxu0 %v491
            %v742 = vpop.f32.mrb[0].mxu0
            %v743 = vadd.f32 0.0, %v742
            %v744 = vpop.f32.mrb[0].mxu0
            %745 = vmatprep.mubr.f32.mxu0 0.0
            %746 = vmatmul.mubr.f32.gmra.mrb[0].mxu0 %v492
            %v747 = vpop.f32.mrb[0].mxu0
            %v748 = vadd.f32 0.0, %v747
            %v749 = vpop.f32.mrb[0].mxu0
            %750 = vmatprep.mubr.f32.mxu0 0.0
            %751 = vmatmul.mubr.f32.gmra.mrb[0].mxu0 %v493
            %v752 = vpop.f32.mrb[0].mxu0
            %v753 = vadd.f32 0.0, %v752
            %v754 = vpop.f32.mrb[0].mxu0
            %755 = vmatprep.mubr.f32.mxu0 0.0
            %756 = vmatmul.mubr.f32.gmra.mrb[0].mxu0 %v494
            %v757 = vpop.f32.mrb[0].mxu0
            %v758 = vadd.f32 0.0, %v757
            %v759 = vpop.f32.mrb[0].mxu0
            %760 = vmatprep.mubr.f32.mxu0 0.0
            %761 = vmatmul.mubr.f32.gmra.mrb[0].mxu0 %v495
            %v762 = vpop.f32.mrb[0].mxu0
            %v763 = vadd.f32 0.0, %v762
            %v764 = vpop.f32.mrb[0].mxu0
            %765 = vmatprep.mubr.f32.mxu0 0.0
            %766 = vmatmul.mubr.f32.gmra.mrb[0].mxu0 %v496
            %v767 = vpop.f32.mrb[0].mxu0
            %v768 = vadd.f32 0.0, %v767
            %v769 = vpop.f32.mrb[0].mxu0
            %770 = vmatprep.mubr.f32.mxu0 0.0
            %771 = vmatmul.mubr.f32.gmra.mrb[0].mxu0 %v497
            %v772 = vpop.f32.mrb[0].mxu0
            %v773 = vadd.f32 0.0, %v772
            %v774 = vpop.f32.mrb[0].mxu0
            %775 = vmatprep.mubr.f32.mxu0 0.0
            %776 = vmatmul.mubr.f32.gmra.mrb[0].mxu0 %v498
            %v777 = vpop.f32.mrb[0].mxu0
            %v778 = vadd.f32 0.0, %v777
            %v779 = vpop.f32.mrb[0].mxu0
            %780 = vmatprep.mubr.f32.mxu0 0.0
            %781 = vmatmul.mubr.f32.gmra.mrb[0].mxu0 %v499
            %v782 = vpop.f32.mrb[0].mxu0
            %v783 = vadd.f32 0.0, %v782
            %v784 = vpop.f32.mrb[0].mxu0
            %785 = vmatprep.mubr.f32.mxu0 0.0
            %786 = vmatmul.mubr.f32.gmra.mrb[0].mxu0 %v500
            %v787 = vpop.f32.mrb[0].mxu0
            %v788 = vadd.f32 0.0, %v787
            %v789 = vpop.f32.mrb[0].mxu0
            %790 = vmatprep.mubr.f32.mxu0 0.0
            %791 = vmatmul.mubr.f32.gmra.mrb[0].mxu0 %v501
            %v792 = vpop.f32.mrb[0].mxu0
            %v793 = vadd.f32 0.0, %v792
            %v794 = vpop.f32.mrb[0].mxu0
            %795 = vmatprep.mubr.f32.mxu0 0.0
            %796 = vmatmul.mubr.f32.gmra.mrb[0].mxu0 %v502
            %v797 = vpop.f32.mrb[0].mxu0
            %v798 = vadd.f32 0.0, %v797
            %v799 = vpop.f32.mrb[0].mxu0
            %800 = vmatprep.mubr.f32.mxu0 0.0
            %801 = vmatmul.mubr.f32.gmra.mrb[0].mxu0 %v503
            %v802 = vpop.f32.mrb[0].mxu0
            %v803 = vadd.f32 0.0, %v802
            %v804 = vpop.f32.mrb[0].mxu0
            %805 = vmatprep.mubr.f32.mxu0 0.0
            %806 = vmatmul.mubr.f32.gmra.mrb[0].mxu0 %v504
            %v807 = vpop.f32.mrb[0].mxu0
            %v808 = vadd.f32 0.0, %v807
            %v809 = vpop.f32.mrb[0].mxu0
            %810 = vdwg.mxu0
            %v811 = vadd.f32 %v733, %v738
            %v812 = vadd.f32 %v811, %v743
            %v813 = vadd.f32 %v812, %v748
            %v814 = vadd.f32 %v813, %v753
            %v815 = vadd.f32 %v814, %v758
            %v816 = vadd.f32 %v815, %v763
            %v817 = vadd.f32 %v816, %v768
            %v818 = vadd.f32 %v817, %v773
            %v819 = vadd.f32 %v818, %v778
            %v820 = vadd.f32 %v819, %v783
            %v821 = vadd.f32 %v820, %v788
            %v822 = vadd.f32 %v821, %v793
            %v823 = vadd.f32 %v822, %v798
            %v824 = vadd.f32 %v823, %v803
            %v825 = vadd.f32 %v824, %v808
            %v826 = vrot.slane %v825, 4
            %v827 = vadd.f32 %v825, %v826
            %v828 = vrot.slane %v827, 2
            %v829 = vadd.f32 %v827, %v828
            %v830 = vrot.slane %v829, 1
            %v831 = vadd.f32 %v829, %v830
            %832 = vst [vmem:[#allocation9] sm:$0x1] %v831
          $region60: #{tpu_custom_call.1} parent=55 // pred_fallthru
            _
        $region56: #{tpu_custom_call.1} parent=39 // pred_fallthru
          _
        // Predicated region
        $region61: #{tpu_custom_call.1} parent=39 // pred_check
          %p833 = pneg %p274
        $region62: #{tpu_custom_call.1} parent=39 // pred_check_branch
          %835 = sbr.rel (%p833) target = $region64
        $region63: #{tpu_custom_call.1} parent=39 // pred_region
          %v836 = vpack.c.bf16 %v350, %v349
          %v837 = vld [vmem:[#allocation8] sm:$0xff]
          %v838 = vld [vmem:[#allocation8 + $0x8] sm:$0xff]
          %v839 = vld [vmem:[#allocation8 + $0x10] sm:$0xff]
          %v840 = vld [vmem:[#allocation8 + $0x18] sm:$0xff]
          %v841 = vld [vmem:[#allocation8 + $0x20] sm:$0xff]
          %v842 = vld [vmem:[#allocation8 + $0x28] sm:$0xff]
          %v843 = vld [vmem:[#allocation8 + $0x30] sm:$0xff]
          %v844 = vld [vmem:[#allocation8 + $0x38] sm:$0xff]
          %v845 = vld [vmem:[#allocation9] sm:$0x1]
          %v847 = vlaneseq
          %v848 = vshrl.u32 %v847, 7
          %v849 = vsub.s32 0, %v848
          %v850 = vrot.slane %v845, %v849
          %852 = vmatprep.subr.bf16.mxu0 0
          %853 = vmatpush1.bf16.msra.mxu0 %v837
          %854 = vmatprep.subr.bf16.mxu0 0
          %855 = vmatpush1.bf16.msra.mxu0 %v838
          %856 = vmatprep.subr.bf16.mxu0 0
          %857 = vmatpush1.bf16.msra.mxu0 %v839
          %858 = vmatprep.subr.bf16.mxu0 0
          %859 = vmatpush1.bf16.msra.mxu0 %v840
          %860 = vmatprep.subr.bf16.mxu0 0
          %861 = vmatpush1.bf16.msra.mxu0 %v841
          %862 = vmatprep.subr.bf16.mxu0 0
          %863 = vmatpush1.bf16.msra.mxu0 %v842
          %864 = vmatprep.subr.bf16.mxu0 0
          %865 = vmatpush1.bf16.msra.mxu0 %v843
          %866 = vmatprep.subr.bf16.mxu0 0
          %867 = vmatpush1.bf16.msra.mxu0 %v844
          %868 = vmatprep.subr.bf16.mxu0 0
          %869 = vmatpush1.bf16.msra.mxu0 0
          %870 = vmatprep.subr.bf16.mxu0 0
          %871 = vmatpush1.bf16.msra.mxu0 0
          %872 = vmatprep.subr.bf16.mxu0 0
          %873 = vmatpush1.bf16.msra.mxu0 0
          %874 = vmatprep.subr.bf16.mxu0 0
          %875 = vmatpush1.bf16.msra.mxu0 0
          %876 = vmatprep.subr.bf16.mxu0 0
          %877 = vmatpush1.bf16.msra.mxu0 0
          %878 = vmatprep.subr.bf16.mxu0 0
          %879 = vmatpush1.bf16.msra.mxu0 0
          %880 = vmatprep.subr.bf16.mxu0 0
          %881 = vmatpush1.bf16.msra.mxu0 0
          %882 = vmatprep.subr.bf16.mxu0 0
          %883 = vmatpush1.bf16.msra.mxu0 0
          %884 = vmatprep.mubr.bf16.mxu0 0
          %885 = vmatmul.mubr.bf16.gmra.mrb[0].mxu0 %v836
          %v886 = vpop.f32.mrb[0].mxu0
          %v887 = vadd.f32 %v850, %v886
          %v888 = vpop.f32.mrb[0].mxu0
          %v889 = vpop.f32.mrb[0].mxu0
          %v890 = vadd.f32 %v850, %v889
          %v891 = vpop.f32.mrb[0].mxu0
          %892 = vdwg.mxu0
          %v893 = vmax.f32 %v887, 0.0
          %v894 = vmax.f32 %v890, 0.0
          %v895 = vld [vmem:[#allocation4] sm:$0x1]
          %v896 = vadd.f32 %v893, %v894
          %v897 = vrot.slane %v896, 4
          %v898 = vadd.f32 %v896, %v897
          %v899 = vrot.slane %v898, 2
          %v900 = vadd.f32 %v898, %v899
          %v901 = vrot.slane %v900, 1
          %v902 = vadd.f32 %v900, %v901
          %v903 = vadd.f32 %v895, %v902
          %904 = vst [vmem:[#allocation4] sm:$0x1] %v903
          %v905 = vld [vmem:[#allocation5] sm:$0x1]
          %v906 = vmul.f32 %v893, %v893
          %v907 = vmul.f32 %v894, %v894
          %v908 = vadd.f32 %v906, %v907
          %v909 = vrot.slane %v908, 4
          %v910 = vadd.f32 %v908, %v909
          %v911 = vrot.slane %v910, 2
          %v912 = vadd.f32 %v910, %v911
          %v913 = vrot.slane %v912, 1
          %v914 = vadd.f32 %v912, %v913
          %v915 = vadd.f32 %v905, %v914
          %916 = vst [vmem:[#allocation5] sm:$0x1] %v915
          %p917 = scmp.eq.s32.totalorder %s22, 3
          // Predicated region
          $region65: #{tpu_custom_call.1} parent=63 // pred_check
            %p918 = pneg %p917
          $region66: #{tpu_custom_call.1} parent=63 // pred_check_branch
            %920 = sbr.rel (%p918) target = $region68
          $region67: #{tpu_custom_call.1} parent=63 // pred_region
            %v921 = vld [vmem:[#allocation4] sm:$0x1]
            %v922 = vmul.f32 %v921, 0.015625
            %v923 = vld [vmem:[#allocation5] sm:$0x1]
            %v924 = vmul.f32 %v923, 0.015625
            %v925 = vmul.f32 %v922, %v922
            %v926 = vsub.f32 %v924, %v925
            %v927 = vmax.f32 %v926, 0.0
            %v928 = vld [vmem:[%s3] sm:$0x1]
            %v929 = vadd.f32 %v927, 1e-05
            %v930 = vrsqrt.pop %v929
            %v931 = vmul.f32 %v928, %v930
            %932 = vst [vmem:[#allocation6] sm:$0x1] %v931
            %v933 = vld [vmem:[%s4] sm:$0x1]
            %v934 = vmul.f32 %v922, %v931
            %v935 = vsub.f32 %v933, %v934
            %936 = vst [vmem:[#allocation7] sm:$0x1] %v935
          $region68: #{tpu_custom_call.1} parent=63 // pred_fallthru
            _
        $region64: #{tpu_custom_call.1} parent=39 // pred_fallthru
          _
        %p937 = scmp.eq.s32.totalorder %s21, 2
        // Predicated region
        $region69: #{tpu_custom_call.1} parent=39 // pred_check
          %p938 = pneg %p937
        $region70: #{tpu_custom_call.1} parent=39 // pred_check_branch
          %940 = sbr.rel (%p938) target = $region72
        $region71: #{tpu_custom_call.1} parent=39 // pred_region
          %v941 = vpack.c.bf16 %v350, %v349
          %v942 = vld [vmem:[#allocation8] sm:$0xff]
          %v943 = vld [vmem:[#allocation8 + $0x8] sm:$0xff]
          %v944 = vld [vmem:[#allocation8 + $0x10] sm:$0xff]
          %v945 = vld [vmem:[#allocation8 + $0x18] sm:$0xff]
          %v946 = vld [vmem:[#allocation8 + $0x20] sm:$0xff]
          %v947 = vld [vmem:[#allocation8 + $0x28] sm:$0xff]
          %v948 = vld [vmem:[#allocation8 + $0x30] sm:$0xff]
          %v949 = vld [vmem:[#allocation8 + $0x38] sm:$0xff]
          %v950 = vld [vmem:[#allocation9] sm:$0x1]
          %v952 = vlaneseq
          %v953 = vshrl.u32 %v952, 7
          %v954 = vsub.s32 0, %v953
          %v955 = vrot.slane %v950, %v954
          %957 = vmatprep.subr.bf16.mxu0 0
          %958 = vmatpush1.bf16.msra.mxu0 %v942
          %959 = vmatprep.subr.bf16.mxu0 0
          %960 = vmatpush1.bf16.msra.mxu0 %v943
          %961 = vmatprep.subr.bf16.mxu0 0
          %962 = vmatpush1.bf16.msra.mxu0 %v944
          %963 = vmatprep.subr.bf16.mxu0 0
          %964 = vmatpush1.bf16.msra.mxu0 %v945
          %965 = vmatprep.subr.bf16.mxu0 0
          %966 = vmatpush1.bf16.msra.mxu0 %v946
          %967 = vmatprep.subr.bf16.mxu0 0
          %968 = vmatpush1.bf16.msra.mxu0 %v947
          %969 = vmatprep.subr.bf16.mxu0 0
          %970 = vmatpush1.bf16.msra.mxu0 %v948
          %971 = vmatprep.subr.bf16.mxu0 0
          %972 = vmatpush1.bf16.msra.mxu0 %v949
          %973 = vmatprep.subr.bf16.mxu0 0
          %974 = vmatpush1.bf16.msra.mxu0 0
          %975 = vmatprep.subr.bf16.mxu0 0
          %976 = vmatpush1.bf16.msra.mxu0 0
          %977 = vmatprep.subr.bf16.mxu0 0
          %978 = vmatpush1.bf16.msra.mxu0 0
          %979 = vmatprep.subr.bf16.mxu0 0
          %980 = vmatpush1.bf16.msra.mxu0 0
          %981 = vmatprep.subr.bf16.mxu0 0
          %982 = vmatpush1.bf16.msra.mxu0 0
          %983 = vmatprep.subr.bf16.mxu0 0
          %984 = vmatpush1.bf16.msra.mxu0 0
          %985 = vmatprep.subr.bf16.mxu0 0
          %986 = vmatpush1.bf16.msra.mxu0 0
          %987 = vmatprep.subr.bf16.mxu0 0
          %988 = vmatpush1.bf16.msra.mxu0 0
          %989 = vmatprep.mubr.bf16.mxu0 0
          %990 = vmatmul.mubr.bf16.gmra.mrb[0].mxu0 %v941
          %v991 = vpop.f32.mrb[0].mxu0
          %v992 = vadd.f32 %v955, %v991
          %v993 = vpop.f32.mrb[0].mxu0
          %v994 = vpop.f32.mrb[0].mxu0
          %v995 = vadd.f32 %v955, %v994
          %v996 = vpop.f32.mrb[0].mxu0
          %997 = vdwg.mxu0
          %v998 = vmax.f32 %v992, 0.0
          %v999 = vmax.f32 %v995, 0.0
          %v1000 = vld [vmem:[#allocation6] sm:$0x1]
          %v1002 = vlaneseq
          %v1003 = vshrl.u32 %v1002, 7
          %v1004 = vsub.s32 0, %v1003
          %v1005 = vrot.slane %v1000, %v1004
          %v1007 = vmul.f32 %v998, %v1005
          %v1008 = vmul.f32 %v999, %v1005
          %v1009 = vld [vmem:[#allocation7] sm:$0x1]
          %v1011 = vlaneseq
          %v1012 = vshrl.u32 %v1011, 7
          %v1013 = vsub.s32 0, %v1012
          %v1014 = vrot.slane %v1009, %v1013
          %v1016 = vadd.f32 %v1007, %v1014
          %v1017 = vadd.f32 %v1008, %v1014
          %1018 = vst.msk [vmem:[%s261] sm:$0xff] %vm304, %v1016
          %1019 = vst.msk [vmem:[%s261 + $0x8] sm:$0xff] %vm304, %v1017
        $region72: #{tpu_custom_call.1} parent=39 // pred_fallthru
          _
        %p1020 = scmp.eq.s32.totalorder %s21, 2
        %s1021 = scalar_select %p1020, %s22, 0
        %s1022 = smul.u32 2, %s1021
        %p1023 = scmp.lt.s32.totalorder %s1022, 7
        %s1024 = scalar_select %p1023, %s1022, 7
        %s1025 = smul.addr %s1024, 8
        %s1026 = scalar_lea.vmem %s5, %s1025
        // Predicated region
        $region73: #{tpu_custom_call.1} parent=39 // pred_check
          %p1027 = pneg %p161
        $region74: #{tpu_custom_call.1} parent=39 // pred_check_branch
          %1029 = sbr.rel (%p1027) target = $region76
        $region75: #{tpu_custom_call.1} parent=39 // pred_region
          %p1030 = scmp.eq.s32.totalorder %s21, 2
          %s1031 = scalar_select %p1030, %s22, 0
          %s1032 = smul.u32 2, %s1031
        $region76: #{tpu_custom_call.1} parent=39 // pred_fallthru
          _
      $region40: #{tpu_custom_call.1} parent=5 // pred_fallthru
        _
      %p1033 = scmp.le.s32.totalorder 2, %s12
      // Predicated region
      $region77: #{tpu_custom_call.1} parent=5 // pred_check
        %p1034 = pneg %p1033
      $region78: #{tpu_custom_call.1} parent=5 // pred_check_branch
        %1036 = sbr.rel (%p1034) target = $region80
      $region79: #{tpu_custom_call.1} parent=5 // pred_region
        %s1037 = ssub.s32 %s12, 2
        // Predicated region
        $region81: #{tpu_custom_call.1} parent=79 // pred_check
          %p1038 = pneg %p167
        $region82: #{tpu_custom_call.1} parent=79 // pred_check_branch
          %1040 = sbr.rel (%p1038) target = $region84
        $region83: #{tpu_custom_call.1} parent=79 // pred_region
          %p1041 = scmp.eq.s32.totalorder %s23, 2
          %s1042 = scalar_select %p1041, %s24, 0
          %s1043 = smul.u32 2, %s1042
          %p1044 = scmp.lt.s32.totalorder %s1043, 7
          %s1045 = scalar_select %p1044, %s1043, 7
          %s1046 = smul.addr %s1045, 8
          %s1047 = scalar_lea.vmem %s5, %s1046
        $region84: #{tpu_custom_call.1} parent=79 // pred_fallthru
          _
      $region80: #{tpu_custom_call.1} parent=5 // pred_fallthru
        _
    $region6: #{tpu_custom_call.1} parent=1 // loop_footer
      %s16 = sadd.s32 1, %s12
    $region7: #{tpu_custom_call.1} parent=1 // loop_footer_branch
      %11 = sbr.rel target = $region3
    $region8: #{tpu_custom_call.1} parent=1 // loop_exit
      _
    %1048 = vsyncpa [#allocation11], 1
    %s1049 = scalar_lea.sflag [#allocation11], 1
    %1050 = vsyncpa %s1049, 1

</llo_original>
